<compile_context>
chip_gen: v5e
topology: v5e:2x2
jax: 0.10.0
libtpu: 0.0.40
codegen_flags: <defaults>
</compile_context>

<pallas_src>
import functools

import jax
import jax.numpy as jnp
import numpy as np
from jax.experimental import pallas as pl
from jax.experimental.pallas import tpu as pltpu

FG_BIAS = 1.0  # forget_gate_bias=1 in LayerLSTMCell


def _lstm_cell_carried(z_in, h, c, wfg_ref, bg_ref, H):
    """LayerLSTMCell step with carried (h, c).

    Gate columns are pre-permuted to [i, f, o, g] and FG_BIAS is folded into
    the bias, so one sigmoid covers a contiguous 3H slice and one tanh the
    last H.  The x/h matmuls are fused: [z_in | h] @ [Wih_t; Whh_t].
    """
    z = jnp.concatenate([z_in, h], axis=-1)                       # (T, 2H)
    gates = (jnp.dot(z, wfg_ref[...], preferred_element_type=jnp.float32)
             + bg_ref[...])                                       # (T, 4H)
    sig = jax.nn.sigmoid(gates[:, :3 * H])
    i = sig[:, 0 * H:1 * H]
    f = sig[:, 1 * H:2 * H]
    o = sig[:, 2 * H:3 * H]
    g = jnp.tanh(gates[:, 3 * H:])
    c_new = f * c + i * g
    h_new = o * jnp.tanh(c_new)
    return h_new, c_new


def _lstm_cell_reset(z_in, wih_ref, bg_ref, H):
    """Reset path (h = c = 0): the h@Whh matmul and f*c are dead and skipped."""
    gates = (jnp.dot(z_in, wih_ref[...], preferred_element_type=jnp.float32)
             + bg_ref[...])
    sig = jax.nn.sigmoid(gates[:, :3 * H])
    i = sig[:, 0 * H:1 * H]
    o = sig[:, 2 * H:3 * H]
    g = jnp.tanh(gates[:, 3 * H:])
    c_new = i * g
    h_new = o * jnp.tanh(c_new)
    return h_new, c_new


def _meta_kernel_carried(x_ref, state_ref, w1_ref, b1_ref,
                         wfg0_ref, bg0_ref, wfg1_ref, bg1_ref,
                         wout_ref, bout_ref,
                         theta_ref, state_out_ref, *, H):
    x = (jnp.dot(x_ref[...], w1_ref[...], preferred_element_type=jnp.float32)
         + b1_ref[...])
    st = state_ref[...]
    h0, c0 = st[:, 0 * H:1 * H], st[:, 1 * H:2 * H]
    h1, c1 = st[:, 2 * H:3 * H], st[:, 3 * H:4 * H]
    h0, c0 = _lstm_cell_carried(x, h0, c0, wfg0_ref, bg0_ref, H)
    h1, c1 = _lstm_cell_carried(h0, h1, c1, wfg1_ref, bg1_ref, H)
    theta_ref[...] = (jnp.dot(h1, wout_ref[...],
                              preferred_element_type=jnp.float32)
                      + bout_ref[...])
    # Lane-dense (T, 4H=128) slab: unmasked full-lane stores.
    state_out_ref[...] = jnp.concatenate([h0, c0, h1, c1], axis=-1)


def _meta_kernel_reset(x_ref, w1_ref, b1_ref,
                       wih0_ref, bg0_ref, wih1_ref, bg1_ref,
                       wout_ref, bout_ref,
                       theta_ref, state_out_ref, *, H):
    x = (jnp.dot(x_ref[...], w1_ref[...], preferred_element_type=jnp.float32)
         + b1_ref[...])
    h0, c0 = _lstm_cell_reset(x, wih0_ref, bg0_ref, H)
    h1, c1 = _lstm_cell_reset(h0, wih1_ref, bg1_ref, H)
    theta_ref[...] = (jnp.dot(h1, wout_ref[...],
                              preferred_element_type=jnp.float32)
                      + bout_ref[...])
    state_out_ref[...] = jnp.concatenate([h0, c0, h1, c1], axis=-1)


def _round_up(n, m):
    return ((n + m - 1) // m) * m


def meta_learner_forward(x, params, state=None, *, tile_n=1024):
    """MetaLearner.forward.

    x      : (N,) or (N, num_inputs) f32 coordinate-wise inputs.
    params : dict from make_params().
    state  : None (== reset_lstm()) or packed (N, 4H) slab [h0|c0|h1|c1] as
             returned by a previous call (carried LSTM state).
    returns: (theta (N,), new_state (N, 4H))
    """
    x = jnp.asarray(x, jnp.float32)
    if x.ndim == 1:                      # x_t.dim() == 1 -> unsqueeze(1)
        x = x[:, None]
    N, Din = x.shape
    H = params["w1"].shape[0]
    theta_scale = 0.1 if Din == 3 else 1.0   # do_scale path (static)

    # ---- weight prep (plain JAX glue, once per call) -----------------------
    # Permute gate columns [i, f, g, o] -> [i, f, o, g].
    perm = np.concatenate([np.arange(0, 2 * H),           # i, f
                           np.arange(3 * H, 4 * H),       # o
                           np.arange(2 * H, 3 * H)])      # g

    def prep_layer(li):
        wih_t = params[f"wih{li}"][perm].T                 # (H, 4H)
        whh_t = params[f"whh{li}"][perm].T                 # (H, 4H)
        bg = (params[f"bih{li}"] + params[f"bhh{li}"])[perm]
        bg = bg.at[H:2 * H].add(FG_BIAS)                   # fold forget-gate bias
        wfused = jnp.concatenate([wih_t, whh_t], axis=0)   # (2H, 4H)
        return wih_t, wfused, bg.reshape(1, 4 * H)

    wih0_t, wfg0, bg0 = prep_layer(0)
    wih1_t, wfg1, bg1 = prep_layer(1)
    w1_t = params["w1"].T.astype(jnp.float32)              # (Din, H)
    b1 = params["b1"].reshape(1, H)
    wout_t = (theta_scale * params["wout"]).T              # (H, 1), scale folded in
    bout = (theta_scale * params["bout"]).reshape(1, 1)

    # ---- tiling over the coordinate axis ------------------------------------
    tile = _round_up(min(tile_n, _round_up(N, 8)), 8)
    n_pad = _round_up(N, tile)
    grid = (n_pad // tile,)
    if n_pad != N:
        x = jnp.pad(x, ((0, n_pad - N), (0, 0)))

    row_spec = lambda w: pl.BlockSpec((tile, w), lambda i: (i, 0))
    full_spec = lambda a: pl.BlockSpec(a.shape, lambda i: (0, 0))

    w_inputs = (w1_t, b1)
    if state is None:
        w_inputs += (wih0_t, bg0, wih1_t, bg1, wout_t, bout)
        kernel = functools.partial(_meta_kernel_reset, H=H)
        inputs = (x,) + w_inputs
        in_specs = [row_spec(Din)] + [full_spec(a) for a in w_inputs]
        k_mm = H
        state_bytes_in = 0
    else:
        state = jnp.asarray(state, jnp.float32)
        assert state.shape == (N, 4 * H), "state must be packed (N, 4H) [h0|c0|h1|c1]"
        if n_pad != N:
            state = jnp.pad(state, ((0, n_pad - N), (0, 0)))
        w_inputs += (wfg0, bg0, wfg1, bg1, wout_t, bout)
        kernel = functools.partial(_meta_kernel_carried, H=H)
        inputs = (x, state) + w_inputs
        in_specs = [row_spec(Din), row_spec(4 * H)] + [full_spec(a) for a in w_inputs]
        k_mm = 2 * H
        state_bytes_in = n_pad * 4 * H * 4

    out_shape = (jax.ShapeDtypeStruct((n_pad, 1), jnp.float32),        # theta
                 jax.ShapeDtypeStruct((n_pad, 4 * H), jnp.float32))    # packed state
    out_specs = (row_spec(1), row_spec(4 * H))

    cost = pl.CostEstimate(
        flops=int(2 * n_pad * (Din * H + 2 * (k_mm * 4 * H) + H)),
        transcendentals=int(10 * H * n_pad),
        bytes_accessed=int(4 * (n_pad * Din + n_pad * (1 + 4 * H)
                                + sum(int(np.prod(a.shape)) for a in w_inputs))
                           + state_bytes_in),
    )

    theta, new_state = pl.pallas_call(
        kernel,
        grid=grid,
        out_shape=out_shape,
        in_specs=in_specs,
        out_specs=out_specs,
        compiler_params=pltpu.CompilerParams(
            dimension_semantics=("parallel",)),   # shards tiles across v7x's 2 TCs
        cost_estimate=cost,
    )(*inputs)

    return theta[:N, 0], new_state[:N]


def _reference_forward(x, params, state=None):
    """Pure-JAX reference of MetaLearner.forward (for correctness check)."""
    x = jnp.asarray(x, jnp.float32)
    if x.ndim == 1:
        x = x[:, None]
    N, Din = x.shape
    H = params["w1"].shape[0]
    xt = x @ params["w1"].T + params["b1"]
    if state is None:
        h = [jnp.zeros((N, H)), jnp.zeros((N, H))]
        c = [jnp.zeros((N, H)), jnp.zeros((N, H))]
    else:
        h = [state[:, 0:H], state[:, 2 * H:3 * H]]
        c = [state[:, H:2 * H], state[:, 3 * H:4 * H]]
    for li in range(2):
        gates = (xt @ params[f"wih{li}"].T + h[li] @ params[f"whh{li}"].T
                 + params[f"bih{li}"] + params[f"bhh{li}"])
        i = jax.nn.sigmoid(gates[:, 0 * H:1 * H])
        f = jax.nn.sigmoid(gates[:, 1 * H:2 * H] + FG_BIAS)
        g = jnp.tanh(gates[:, 2 * H:3 * H])
        o = jax.nn.sigmoid(gates[:, 3 * H:4 * H])
        c[li] = f * c[li] + i * g
        h[li] = o * jnp.tanh(c[li])
        xt = h[li]
    theta = xt @ params["wout"].T + params["bout"]
    if Din == 3:
        theta = 0.1 * theta
    return theta[:, 0], jnp.concatenate([h[0], c[0], h[1], c[1]], axis=-1)


def make_params(key, num_inputs, num_hidden):
    """Deterministic synthetic parameters matching MetaLearner.__init__ shapes."""
    H = num_hidden
    ks = jax.random.split(key, 12)
    s = 0.1
    return {
        "w1": s * jax.random.normal(ks[0], (H, num_inputs), jnp.float32),
        "b1": s * jax.random.normal(ks[1], (H,), jnp.float32),
        "wih0": s * jax.random.normal(ks[2], (4 * H, H), jnp.float32),
        "whh0": s * jax.random.normal(ks[3], (4 * H, H), jnp.float32),
        "bih0": s * jax.random.normal(ks[4], (4 * H,), jnp.float32),
        "bhh0": s * jax.random.normal(ks[5], (4 * H,), jnp.float32),
        "wih1": s * jax.random.normal(ks[6], (4 * H, H), jnp.float32),
        "whh1": s * jax.random.normal(ks[7], (4 * H, H), jnp.float32),
        "bih1": s * jax.random.normal(ks[8], (4 * H,), jnp.float32),
        "bhh1": s * jax.random.normal(ks[9], (4 * H,), jnp.float32),
        "wout": s * jax.random.normal(ks[10], (1, H), jnp.float32),
        "bout": s * jax.random.normal(ks[11], (1,), jnp.float32),
    }


if __name__ == "__main__":
    key = jax.random.PRNGKey(0)
    H = 32

    # Case 1: num_inputs=1 (1-D gradient input), multi-tile grid with padding,
    #         two chained steps: reset_lstm() then carried LSTM state.
    k1, k2, k3, kp1, kp2 = jax.random.split(key, 5)
    N1 = 300
    params1 = make_params(kp1, 1, H)
    g0 = jax.random.normal(k1, (N1,), jnp.float32)
    g1 = jax.random.normal(k2, (N1,), jnp.float32)

    th_a, st_a = meta_learner_forward(g0, params1, state=None, tile_n=128)
    th_b, st_b = meta_learner_forward(g1, params1, state=st_a, tile_n=128)
    jax.block_until_ready((th_a, st_a, th_b, st_b))

    th_a_ref, st_a_ref = _reference_forward(g0, params1, None)
    th_b_ref, st_b_ref = _reference_forward(g1, params1, st_a_ref)
    assert np.allclose(np.asarray(th_a), np.asarray(th_a_ref), atol=1e-5)
    assert np.allclose(np.asarray(st_a), np.asarray(st_a_ref), atol=1e-5)
    assert np.allclose(np.asarray(th_b), np.asarray(th_b_ref), atol=1e-5)
    assert np.allclose(np.asarray(st_b), np.asarray(st_b_ref), atol=1e-5)

    # Case 2: num_inputs=3 triggers the do_scale (0.1x) path.
    N2 = 64
    params2 = make_params(kp2, 3, H)
    x2 = jax.random.normal(k3, (N2, 3), jnp.float32)
    th2, st2 = meta_learner_forward(x2, params2)
    jax.block_until_ready((th2, st2))
    th2_ref, st2_ref = _reference_forward(x2, params2, None)
    assert np.allclose(np.asarray(th2), np.asarray(th2_ref), atol=1e-5)
    assert np.allclose(np.asarray(st2), np.asarray(st2_ref), atol=1e-5)

    # TODO(synk): meta_update / step_loss / final_loss are host-side training
    # utilities around the optimizee and are not part of forward; not kernelized.
    print("KERNEL_OK")
</pallas_src>

<mosaic_0001>
module attributes {stable_mosaic.version = 11 : i64} {
  func.func @_meta_kernel_reset(%arg0: i32, %arg1: memref<128x1xf32, #tpu.memory_space<vmem>>, %arg2: memref<1x32xf32, #tpu.memory_space<vmem>>, %arg3: memref<1x32xf32, #tpu.memory_space<vmem>>, %arg4: memref<32x128xf32, #tpu.memory_space<vmem>>, %arg5: memref<1x128xf32, #tpu.memory_space<vmem>>, %arg6: memref<32x128xf32, #tpu.memory_space<vmem>>, %arg7: memref<1x128xf32, #tpu.memory_space<vmem>>, %arg8: memref<32x1xf32, #tpu.memory_space<vmem>>, %arg9: memref<1x1xf32, #tpu.memory_space<vmem>>, %arg10: memref<128x1xf32, #tpu.memory_space<vmem>>, %arg11: memref<128x128xf32, #tpu.memory_space<vmem>>) attributes {dimension_semantics = [#tpu.dimension_semantics<parallel>], iteration_bounds = array<i64: 3>, scalar_prefetch = 0 : i64, scratch_operands = 0 : i64, tpu.core_type = #tpu.core_type<tc>, window_params = [{transform_indices = @transform_0, window_bounds = array<i64: 128, 1>}, {pipeline_mode = #tpu.pipeline_mode<synchronous>, transform_indices = @transform_1, window_bounds = array<i64: 1, 32>}, {pipeline_mode = #tpu.pipeline_mode<synchronous>, transform_indices = @transform_2, window_bounds = array<i64: 1, 32>}, {pipeline_mode = #tpu.pipeline_mode<synchronous>, transform_indices = @transform_3, window_bounds = array<i64: 32, 128>}, {pipeline_mode = #tpu.pipeline_mode<synchronous>, transform_indices = @transform_4, window_bounds = array<i64: 1, 128>}, {pipeline_mode = #tpu.pipeline_mode<synchronous>, transform_indices = @transform_5, window_bounds = array<i64: 32, 128>}, {pipeline_mode = #tpu.pipeline_mode<synchronous>, transform_indices = @transform_6, window_bounds = array<i64: 1, 128>}, {pipeline_mode = #tpu.pipeline_mode<synchronous>, transform_indices = @transform_7, window_bounds = array<i64: 32, 1>}, {pipeline_mode = #tpu.pipeline_mode<synchronous>, transform_indices = @transform_8, window_bounds = array<i64: 1, 1>}, {transform_indices = @transform_9, window_bounds = array<i64: 128, 1>}, {transform_indices = @transform_10, window_bounds = array<i64: 128, 128>}]} {
    %c0 = arith.constant 0 : index
    %c0_0 = arith.constant 0 : index
    %0 = vector.load %arg1[%c0, %c0_0] : memref<128x1xf32, #tpu.memory_space<vmem>>, vector<128x1xf32>
    %c0_1 = arith.constant 0 : index
    %c0_2 = arith.constant 0 : index
    %1 = vector.load %arg2[%c0_1, %c0_2] : memref<1x32xf32, #tpu.memory_space<vmem>>, vector<1x32xf32>
    %cst = arith.constant dense<0.000000e+00> : vector<128x32xf32>
    %2 = tpu.matmul %0, %1, %cst {dimension_numbers = #tpu.dot_dimension_numbers<[1], [0], [0], [1], [0, 0, 1, 1], [], []>} : vector<128x1xf32>, vector<1x32xf32>, vector<128x32xf32> -> vector<128x32xf32>
    %c0_3 = arith.constant 0 : index
    %c0_4 = arith.constant 0 : index
    %3 = vector.load %arg3[%c0_3, %c0_4] : memref<1x32xf32, #tpu.memory_space<vmem>>, vector<1x32xf32>
    %4 = vector.broadcast %3 : vector<1x32xf32> to vector<128x32xf32>
    %5 = arith.addf %2, %4 : vector<128x32xf32>
    %c0_5 = arith.constant 0 : index
    %c0_6 = arith.constant 0 : index
    %6 = vector.load %arg4[%c0_5, %c0_6] : memref<32x128xf32, #tpu.memory_space<vmem>>, vector<32x128xf32>
    %cst_7 = arith.constant dense<0.000000e+00> : vector<128x128xf32>
    %7 = tpu.matmul %5, %6, %cst_7 {dimension_numbers = #tpu.dot_dimension_numbers<[1], [0], [0], [1], [0, 0, 1, 1], [], []>} : vector<128x32xf32>, vector<32x128xf32>, vector<128x128xf32> -> vector<128x128xf32>
    %c0_8 = arith.constant 0 : index
    %c0_9 = arith.constant 0 : index
    %8 = vector.load %arg5[%c0_8, %c0_9] : memref<1x128xf32, #tpu.memory_space<vmem>>, vector<1x128xf32>
    %9 = vector.broadcast %8 : vector<1x128xf32> to vector<128x128xf32>
    %10 = arith.addf %7, %9 : vector<128x128xf32>
    %11 = vector.extract_strided_slice %10 {offsets = [0, 0], sizes = [128, 96], strides = [1, 1]} : vector<128x128xf32> to vector<128x96xf32>
    %12 = arith.negf %11 : vector<128x96xf32>
    %13 = math.exp %12 : vector<128x96xf32>
    %cst_10 = arith.constant 1.000000e+00 : f32
    %14 = vector.broadcast %cst_10 : f32 to vector<128x96xf32>
    %15 = arith.addf %14, %13 : vector<128x96xf32>
    %16 = arith.divf %14, %15 : vector<128x96xf32>
    %17 = vector.extract_strided_slice %16 {offsets = [0, 0], sizes = [128, 32], strides = [1, 1]} : vector<128x96xf32> to vector<128x32xf32>
    %18 = vector.extract_strided_slice %16 {offsets = [0, 64], sizes = [128, 32], strides = [1, 1]} : vector<128x96xf32> to vector<128x32xf32>
    %19 = vector.extract_strided_slice %10 {offsets = [0, 96], sizes = [128, 32], strides = [1, 1]} : vector<128x128xf32> to vector<128x32xf32>
    %20 = math.tanh %19 : vector<128x32xf32>
    %21 = arith.mulf %17, %20 : vector<128x32xf32>
    %22 = math.tanh %21 : vector<128x32xf32>
    %23 = arith.mulf %18, %22 : vector<128x32xf32>
    %c0_11 = arith.constant 0 : index
    %c0_12 = arith.constant 0 : index
    %24 = vector.load %arg6[%c0_11, %c0_12] : memref<32x128xf32, #tpu.memory_space<vmem>>, vector<32x128xf32>
    %cst_13 = arith.constant dense<0.000000e+00> : vector<128x128xf32>
    %25 = tpu.matmul %23, %24, %cst_13 {dimension_numbers = #tpu.dot_dimension_numbers<[1], [0], [0], [1], [0, 0, 1, 1], [], []>} : vector<128x32xf32>, vector<32x128xf32>, vector<128x128xf32> -> vector<128x128xf32>
    %c0_14 = arith.constant 0 : index
    %c0_15 = arith.constant 0 : index
    %26 = vector.load %arg7[%c0_14, %c0_15] : memref<1x128xf32, #tpu.memory_space<vmem>>, vector<1x128xf32>
    %27 = vector.broadcast %26 : vector<1x128xf32> to vector<128x128xf32>
    %28 = arith.addf %25, %27 : vector<128x128xf32>
    %29 = vector.extract_strided_slice %28 {offsets = [0, 0], sizes = [128, 96], strides = [1, 1]} : vector<128x128xf32> to vector<128x96xf32>
    %30 = arith.negf %29 : vector<128x96xf32>
    %31 = math.exp %30 : vector<128x96xf32>
    %cst_16 = arith.constant 1.000000e+00 : f32
    %32 = vector.broadcast %cst_16 : f32 to vector<128x96xf32>
    %33 = arith.addf %32, %31 : vector<128x96xf32>
    %34 = arith.divf %32, %33 : vector<128x96xf32>
    %35 = vector.extract_strided_slice %34 {offsets = [0, 0], sizes = [128, 32], strides = [1, 1]} : vector<128x96xf32> to vector<128x32xf32>
    %36 = vector.extract_strided_slice %34 {offsets = [0, 64], sizes = [128, 32], strides = [1, 1]} : vector<128x96xf32> to vector<128x32xf32>
    %37 = vector.extract_strided_slice %28 {offsets = [0, 96], sizes = [128, 32], strides = [1, 1]} : vector<128x128xf32> to vector<128x32xf32>
    %38 = math.tanh %37 : vector<128x32xf32>
    %39 = arith.mulf %35, %38 : vector<128x32xf32>
    %40 = math.tanh %39 : vector<128x32xf32>
    %41 = arith.mulf %36, %40 : vector<128x32xf32>
    %c0_17 = arith.constant 0 : index
    %c0_18 = arith.constant 0 : index
    %42 = vector.load %arg8[%c0_17, %c0_18] : memref<32x1xf32, #tpu.memory_space<vmem>>, vector<32x1xf32>
    %cst_19 = arith.constant dense<0.000000e+00> : vector<128x1xf32>
    %43 = tpu.matmul %41, %42, %cst_19 {dimension_numbers = #tpu.dot_dimension_numbers<[1], [0], [0], [1], [0, 0, 1, 1], [], []>} : vector<128x32xf32>, vector<32x1xf32>, vector<128x1xf32> -> vector<128x1xf32>
    %c0_20 = arith.constant 0 : index
    %c0_21 = arith.constant 0 : index
    %44 = vector.load %arg9[%c0_20, %c0_21] : memref<1x1xf32, #tpu.memory_space<vmem>>, vector<1x1xf32>
    %45 = vector.broadcast %44 : vector<1x1xf32> to vector<128x1xf32>
    %46 = arith.addf %43, %45 : vector<128x1xf32>
    %c0_22 = arith.constant 0 : index
    %c0_23 = arith.constant 0 : index
    %47 = vector.load %arg10[%c0_22, %c0_23] : memref<128x1xf32, #tpu.memory_space<vmem>>, vector<128x1xf32>
    tpu.vector_store %arg10[%c0_22, %c0_23], %46 {strides = array<i32>} : memref<128x1xf32, #tpu.memory_space<vmem>>, vector<128x1xf32>,
    %48 = tpu.concatenate %23, %21, %41, %39 in 1 : vector<128x32xf32>, vector<128x32xf32>, vector<128x32xf32>, vector<128x32xf32> -> vector<128x128xf32>
    %c0_24 = arith.constant 0 : index
    %c0_25 = arith.constant 0 : index
    %49 = vector.load %arg11[%c0_24, %c0_25] : memref<128x128xf32, #tpu.memory_space<vmem>>, vector<128x128xf32>
    tpu.vector_store %arg11[%c0_24, %c0_25], %48 {strides = array<i32>} : memref<128x128xf32, #tpu.memory_space<vmem>>, vector<128x128xf32>,
    return
  }
  func.func @transform_0(%arg0: i32) -> (i32, i32) {
    %c0_i32 = arith.constant 0 : i32
    %c0_i32_0 = arith.constant 0 : i32
    return %arg0, %c0_i32 : i32, i32
  }
  func.func @transform_1(%arg0: i32) -> (i32, i32) {
    %c0_i32 = arith.constant 0 : i32
    %c0_i32_0 = arith.constant 0 : i32
    %c0_i32_1 = arith.constant 0 : i32
    return %c0_i32, %c0_i32_0 : i32, i32
  }
  func.func @transform_2(%arg0: i32) -> (i32, i32) {
    %c0_i32 = arith.constant 0 : i32
    %c0_i32_0 = arith.constant 0 : i32
    %c0_i32_1 = arith.constant 0 : i32
    return %c0_i32, %c0_i32_0 : i32, i32
  }
  func.func @transform_3(%arg0: i32) -> (i32, i32) {
    %c0_i32 = arith.constant 0 : i32
    %c0_i32_0 = arith.constant 0 : i32
    %c0_i32_1 = arith.constant 0 : i32
    return %c0_i32, %c0_i32_0 : i32, i32
  }
  func.func @transform_4(%arg0: i32) -> (i32, i32) {
    %c0_i32 = arith.constant 0 : i32
    %c0_i32_0 = arith.constant 0 : i32
    %c0_i32_1 = arith.constant 0 : i32
    return %c0_i32, %c0_i32_0 : i32, i32
  }
  func.func @transform_5(%arg0: i32) -> (i32, i32) {
    %c0_i32 = arith.constant 0 : i32
    %c0_i32_0 = arith.constant 0 : i32
    %c0_i32_1 = arith.constant 0 : i32
    return %c0_i32, %c0_i32_0 : i32, i32
  }
  func.func @transform_6(%arg0: i32) -> (i32, i32) {
    %c0_i32 = arith.constant 0 : i32
    %c0_i32_0 = arith.constant 0 : i32
    %c0_i32_1 = arith.constant 0 : i32
    return %c0_i32, %c0_i32_0 : i32, i32
  }
  func.func @transform_7(%arg0: i32) -> (i32, i32) {
    %c0_i32 = arith.constant 0 : i32
    %c0_i32_0 = arith.constant 0 : i32
    %c0_i32_1 = arith.constant 0 : i32
    return %c0_i32, %c0_i32_0 : i32, i32
  }
  func.func @transform_8(%arg0: i32) -> (i32, i32) {
    %c0_i32 = arith.constant 0 : i32
    %c0_i32_0 = arith.constant 0 : i32
    %c0_i32_1 = arith.constant 0 : i32
    return %c0_i32, %c0_i32_0 : i32, i32
  }
  func.func @transform_9(%arg0: i32) -> (i32, i32) {
    %c0_i32 = arith.constant 0 : i32
    %c0_i32_0 = arith.constant 0 : i32
    return %arg0, %c0_i32 : i32, i32
  }
  func.func @transform_10(%arg0: i32) -> (i32, i32) {
    %c0_i32 = arith.constant 0 : i32
    %c0_i32_0 = arith.constant 0 : i32
    return %arg0, %c0_i32 : i32, i32
  }
}

</mosaic_0001>

<llo_original>
// kernel: tpu_custom_call.1
$region0: #{tpu_custom_call.1}
  #allocation0 [shape = 'u32[]', space=smem, size = 0x4, offset = 0x4, fixed_abs, tag = 'smem constant byte address 0x4 - core index']
  #allocation1 [shape = 'u32[72,128]{1,0:T(1,128)}', space=vmem, size = 0x9000, scoped, tag = 'internal scratch']
  #allocation2 [shape = 'f32[1,1]{1,0:T(1,128)S(1)}', space=vmem, size = 0x200, scoped, tag = 'scoped memory for tpu_custom_call.1']
  %s0 = inlined_call_operand.vmem [shape: f32[384,1], index: 0, kind: input, shape index: {}]
  %s1 = inlined_call_operand.vmem [shape: f32[1,32], index: 1, kind: input, shape index: {}]
  %s2 = inlined_call_operand.vmem [shape: f32[1,32], index: 2, kind: input, shape index: {}]
  %s3 = inlined_call_operand.vmem [shape: f32[32,128], index: 3, kind: input, shape index: {}]
  %s4 = inlined_call_operand.vmem [shape: f32[1,128], index: 4, kind: input, shape index: {}]
  %s5 = inlined_call_operand.vmem [shape: f32[32,128], index: 5, kind: input, shape index: {}]
  %s6 = inlined_call_operand.vmem [shape: f32[1,128], index: 6, kind: input, shape index: {}]
  %s7 = inlined_call_operand.vmem [shape: f32[32,1], index: 7, kind: input, shape index: {}]
  %s8 = inlined_call_operand.<no memory space> [shape: f32[1,1], index: 8, kind: input, shape index: {}]
  %s9 = inlined_call_operand.vmem [shape: f32[384,1], index: 9, kind: output, shape index: {0}]
  %s10 = inlined_call_operand.hbm [shape: f32[384,128], index: 10, kind: output, shape index: {1}]
  %11 = xla_tuple %s9, %s10
  %s12 = sld [smem:[#allocation0]]
  $region77: #{tpu_custom_call.1} parent=0
    _
  %s14 = ssub.s32 1, %s12
  %s15 = scalar_select 0, %s14, %s12
  %v16 = vstv %s8
  %17 = vst [vmem:[#allocation2] sm:$0x1] %v16
  $region1: #{tpu_custom_call.1} parent=0
    #allocation3 [shape = 'u8[131072]{0}', space=vmem, size = 0x20000, scoped, tag = 'output window, operand 1']
    #allocation4 [shape = 's32[2]{0}', space=sflag, size = 0x8, scoped, tag = 'scoped memory for tpu_custom_call.1']
    %18 = vsyncpa [#allocation4], 0
    %s19 = scalar_lea.sflag [#allocation4], 1
    %20 = vsyncpa %s19, 0
    loop: start=0, step=1, limit=5
    $region2: #{tpu_custom_call.1} parent=1 // loop_pre_header
      _
    $region3: #{tpu_custom_call.1} parent=1 // loop_header
      %s22 = sphi 0, %s26
      %p23 = scmp.ge.s32.totalorder %s22, 5
      %s32 = sphi 0, %s34
      %s35 = sphi 0, %s32
      %s36 = sphi 0, %s35
      %s52 = sphi 0, %s36
      %s56 = sphi 0, %s56
      %s58 = sphi 0, %s56
      %s59 = sphi 0, %s58
      %s73 = sphi 0, %s59
      %s77 = sphi 0, %s77
      %s79 = sphi 0, %s77
      %s80 = sphi 0, %s79
      %s94 = sphi 0, %s80
      %s98 = sphi 0, %s98
      %s100 = sphi 0, %s98
      %s101 = sphi 0, %s100
      %s115 = sphi 0, %s101
      %s119 = sphi 0, %s119
      %s121 = sphi 0, %s119
      %s122 = sphi 0, %s121
      %s136 = sphi 0, %s122
      %s140 = sphi 0, %s140
      %s142 = sphi 0, %s140
      %s143 = sphi 0, %s142
      %s157 = sphi 0, %s143
      %s161 = sphi 0, %s161
      %s163 = sphi 0, %s161
      %s164 = sphi 0, %s163
      %s178 = sphi 0, %s164
      %s182 = sphi 0, %s182
      %s184 = sphi 0, %s182
      %s185 = sphi 0, %s184
      %s199 = sphi 0, %s185
      %s203 = sphi 0, %s203
      %s205 = sphi 0, %s203
      %s206 = sphi 0, %s205
      %s220 = sphi 0, %s206
      %s226 = sphi 0, %s228
      %s229 = sphi 0, %s226
      %s230 = sphi 0, %s229
      %s246 = sphi 0, %s230
      %s252 = sphi 0, %s254
      %s255 = sphi 0, %s252
      %s256 = sphi 0, %s255
      %s272 = sphi 0, %s256
    $region4: #{tpu_custom_call.1} parent=1 // loop_header_branch
      %25 = sbr.rel (%p23) target = $region8
    $region5: #{tpu_custom_call.1} parent=1 // loop_body
      %s27 = ssub.s32 %s22, 1
      %s28 = ssub.s32 %s22, 2
      %s29 = sadd.s32 %s22, 1
      %s30 = ssub.s32 %s22, %s29
      %p31 = scmp.eq.s32.totalorder %s30, 0
      %s33 = sadd.s32 %s32, 1
      %s34 = scalar_select %p31, %s32, %s33
      %p37 = pneg %p31
      %p38 = scmp.eq.s32.totalorder %s22, 2
      %p39 = por %p37, %p38
      %p40 = scmp.ne.s32.totalorder %s32, %s35
      %p41 = scmp.eq.s32.totalorder %s22, 0
      %p42 = por %p40, %p41
      %p43 = scmp.ne.s32.totalorder %s32, %s35
      %p44 = scmp.eq.s32.totalorder %s27, 2
      %p45 = por %p43, %p44
      %p46 = scmp.ne.s32.totalorder %s35, %s36
      %p47 = scmp.eq.s32.totalorder %s27, 0
      %p48 = por %p46, %p47
      %p49 = scmp.ne.s32.totalorder %s35, %s36
      %p50 = scmp.eq.s32.totalorder %s28, 2
      %p51 = por %p49, %p50
      %p53 = scmp.ne.s32.totalorder %s36, %s52
      %p54 = scmp.eq.s32.totalorder %s28, 0
      %p55 = por %p53, %p54
      %s57 = sadd.s32 %s56, 1
      %p60 = scmp.eq.s32.totalorder %s22, 2
      %p61 = scmp.ne.s32.totalorder %s56, %s58
      %p62 = scmp.eq.s32.totalorder %s22, 0
      %p63 = por %p61, %p62
      %p64 = scmp.ne.s32.totalorder %s56, %s58
      %p65 = scmp.eq.s32.totalorder %s27, 2
      %p66 = por %p64, %p65
      %p67 = scmp.ne.s32.totalorder %s58, %s59
      %p68 = scmp.eq.s32.totalorder %s27, 0
      %p69 = por %p67, %p68
      %p70 = scmp.ne.s32.totalorder %s58, %s59
      %p71 = scmp.eq.s32.totalorder %s28, 2
      %p72 = por %p70, %p71
      %p74 = scmp.ne.s32.totalorder %s59, %s73
      %p75 = scmp.eq.s32.totalorder %s28, 0
      %p76 = por %p74, %p75
      %s78 = sadd.s32 %s77, 1
      %p81 = scmp.eq.s32.totalorder %s22, 2
      %p82 = scmp.ne.s32.totalorder %s77, %s79
      %p83 = scmp.eq.s32.totalorder %s22, 0
      %p84 = por %p82, %p83
      %p85 = scmp.ne.s32.totalorder %s77, %s79
      %p86 = scmp.eq.s32.totalorder %s27, 2
      %p87 = por %p85, %p86
      %p88 = scmp.ne.s32.totalorder %s79, %s80
      %p89 = scmp.eq.s32.totalorder %s27, 0
      %p90 = por %p88, %p89
      %p91 = scmp.ne.s32.totalorder %s79, %s80
      %p92 = scmp.eq.s32.totalorder %s28, 2
      %p93 = por %p91, %p92
      %p95 = scmp.ne.s32.totalorder %s80, %s94
      %p96 = scmp.eq.s32.totalorder %s28, 0
      %p97 = por %p95, %p96
      %s99 = sadd.s32 %s98, 1
      %p102 = scmp.eq.s32.totalorder %s22, 2
      %p103 = scmp.ne.s32.totalorder %s98, %s100
      %p104 = scmp.eq.s32.totalorder %s22, 0
      %p105 = por %p103, %p104
      %p106 = scmp.ne.s32.totalorder %s98, %s100
      %p107 = scmp.eq.s32.totalorder %s27, 2
      %p108 = por %p106, %p107
      %p109 = scmp.ne.s32.totalorder %s100, %s101
      %p110 = scmp.eq.s32.totalorder %s27, 0
      %p111 = por %p109, %p110
      %p112 = scmp.ne.s32.totalorder %s100, %s101
      %p113 = scmp.eq.s32.totalorder %s28, 2
      %p114 = por %p112, %p113
      %p116 = scmp.ne.s32.totalorder %s101, %s115
      %p117 = scmp.eq.s32.totalorder %s28, 0
      %p118 = por %p116, %p117
      %s120 = sadd.s32 %s119, 1
      %p123 = scmp.eq.s32.totalorder %s22, 2
      %p124 = scmp.ne.s32.totalorder %s119, %s121
      %p125 = scmp.eq.s32.totalorder %s22, 0
      %p126 = por %p124, %p125
      %p127 = scmp.ne.s32.totalorder %s119, %s121
      %p128 = scmp.eq.s32.totalorder %s27, 2
      %p129 = por %p127, %p128
      %p130 = scmp.ne.s32.totalorder %s121, %s122
      %p131 = scmp.eq.s32.totalorder %s27, 0
      %p132 = por %p130, %p131
      %p133 = scmp.ne.s32.totalorder %s121, %s122
      %p134 = scmp.eq.s32.totalorder %s28, 2
      %p135 = por %p133, %p134
      %p137 = scmp.ne.s32.totalorder %s122, %s136
      %p138 = scmp.eq.s32.totalorder %s28, 0
      %p139 = por %p137, %p138
      %s141 = sadd.s32 %s140, 1
      %p144 = scmp.eq.s32.totalorder %s22, 2
      %p145 = scmp.ne.s32.totalorder %s140, %s142
      %p146 = scmp.eq.s32.totalorder %s22, 0
      %p147 = por %p145, %p146
      %p148 = scmp.ne.s32.totalorder %s140, %s142
      %p149 = scmp.eq.s32.totalorder %s27, 2
      %p150 = por %p148, %p149
      %p151 = scmp.ne.s32.totalorder %s142, %s143
      %p152 = scmp.eq.s32.totalorder %s27, 0
      %p153 = por %p151, %p152
      %p154 = scmp.ne.s32.totalorder %s142, %s143
      %p155 = scmp.eq.s32.totalorder %s28, 2
      %p156 = por %p154, %p155
      %p158 = scmp.ne.s32.totalorder %s143, %s157
      %p159 = scmp.eq.s32.totalorder %s28, 0
      %p160 = por %p158, %p159
      %s162 = sadd.s32 %s161, 1
      %p165 = scmp.eq.s32.totalorder %s22, 2
      %p166 = scmp.ne.s32.totalorder %s161, %s163
      %p167 = scmp.eq.s32.totalorder %s22, 0
      %p168 = por %p166, %p167
      %p169 = scmp.ne.s32.totalorder %s161, %s163
      %p170 = scmp.eq.s32.totalorder %s27, 2
      %p171 = por %p169, %p170
      %p172 = scmp.ne.s32.totalorder %s163, %s164
      %p173 = scmp.eq.s32.totalorder %s27, 0
      %p174 = por %p172, %p173
      %p175 = scmp.ne.s32.totalorder %s163, %s164
      %p176 = scmp.eq.s32.totalorder %s28, 2
      %p177 = por %p175, %p176
      %p179 = scmp.ne.s32.totalorder %s164, %s178
      %p180 = scmp.eq.s32.totalorder %s28, 0
      %p181 = por %p179, %p180
      %s183 = sadd.s32 %s182, 1
      %p186 = scmp.eq.s32.totalorder %s22, 2
      %p187 = scmp.ne.s32.totalorder %s182, %s184
      %p188 = scmp.eq.s32.totalorder %s22, 0
      %p189 = por %p187, %p188
      %p190 = scmp.ne.s32.totalorder %s182, %s184
      %p191 = scmp.eq.s32.totalorder %s27, 2
      %p192 = por %p190, %p191
      %p193 = scmp.ne.s32.totalorder %s184, %s185
      %p194 = scmp.eq.s32.totalorder %s27, 0
      %p195 = por %p193, %p194
      %p196 = scmp.ne.s32.totalorder %s184, %s185
      %p197 = scmp.eq.s32.totalorder %s28, 2
      %p198 = por %p196, %p197
      %p200 = scmp.ne.s32.totalorder %s185, %s199
      %p201 = scmp.eq.s32.totalorder %s28, 0
      %p202 = por %p200, %p201
      %s204 = sadd.s32 %s203, 1
      %p207 = scmp.eq.s32.totalorder %s22, 2
      %p208 = scmp.ne.s32.totalorder %s203, %s205
      %p209 = scmp.eq.s32.totalorder %s22, 0
      %p210 = por %p208, %p209
      %p211 = scmp.ne.s32.totalorder %s203, %s205
      %p212 = scmp.eq.s32.totalorder %s27, 2
      %p213 = por %p211, %p212
      %p214 = scmp.ne.s32.totalorder %s205, %s206
      %p215 = scmp.eq.s32.totalorder %s27, 0
      %p216 = por %p214, %p215
      %p217 = scmp.ne.s32.totalorder %s205, %s206
      %p218 = scmp.eq.s32.totalorder %s28, 2
      %p219 = por %p217, %p218
      %p221 = scmp.ne.s32.totalorder %s206, %s220
      %p222 = scmp.eq.s32.totalorder %s28, 0
      %p223 = por %p221, %p222
      %s224 = ssub.s32 %s22, %s29
      %p225 = scmp.eq.s32.totalorder %s224, 0
      %s227 = sadd.s32 %s226, 1
      %s228 = scalar_select %p225, %s226, %s227
      %p231 = pneg %p225
      %p232 = scmp.eq.s32.totalorder %s22, 2
      %p233 = por %p231, %p232
      %p234 = scmp.ne.s32.totalorder %s226, %s229
      %p235 = scmp.eq.s32.totalorder %s22, 0
      %p236 = por %p234, %p235
      %p237 = scmp.ne.s32.totalorder %s226, %s229
      %p238 = scmp.eq.s32.totalorder %s27, 2
      %p239 = por %p237, %p238
      %p240 = scmp.ne.s32.totalorder %s229, %s230
      %p241 = scmp.eq.s32.totalorder %s27, 0
      %p242 = por %p240, %p241
      %p243 = scmp.ne.s32.totalorder %s229, %s230
      %p244 = scmp.eq.s32.totalorder %s28, 2
      %p245 = por %p243, %p244
      %p247 = scmp.ne.s32.totalorder %s230, %s246
      %p248 = scmp.eq.s32.totalorder %s28, 0
      %p249 = por %p247, %p248
      %s250 = ssub.s32 %s22, %s29
      %p251 = scmp.eq.s32.totalorder %s250, 0
      %s253 = sadd.s32 %s252, 1
      %s254 = scalar_select %p251, %s252, %s253
      %p257 = pneg %p251
      %p258 = scmp.eq.s32.totalorder %s22, 2
      %p259 = por %p257, %p258
      %p260 = scmp.ne.s32.totalorder %s252, %s255
      %p261 = scmp.eq.s32.totalorder %s22, 0
      %p262 = por %p260, %p261
      %p263 = scmp.ne.s32.totalorder %s252, %s255
      %p264 = scmp.eq.s32.totalorder %s27, 2
      %p265 = por %p263, %p264
      %p266 = scmp.ne.s32.totalorder %s255, %s256
      %p267 = scmp.eq.s32.totalorder %s27, 0
      %p268 = por %p266, %p267
      %p269 = scmp.ne.s32.totalorder %s255, %s256
      %p270 = scmp.eq.s32.totalorder %s28, 2
      %p271 = por %p269, %p270
      %p273 = scmp.ne.s32.totalorder %s256, %s272
      %p274 = scmp.eq.s32.totalorder %s28, 0
      %p275 = por %p273, %p274
      %p276 = scmp.le.s32.totalorder 1, %s22
      %p277 = scmp.lt.s32.totalorder %s22, 4
      %p278 = pnand %p276, %p277
      %p279 = pneg %p278
      // Predicated region
      $region9: #{tpu_custom_call.1} parent=5 // pred_check
        _
      $region10: #{tpu_custom_call.1} parent=5 // pred_check_branch
        %281 = sbr.rel (%p278) target = $region12
      $region11: #{tpu_custom_call.1} parent=5 // pred_region
        %s282 = ssub.s32 %s22, 1
        // Predicated region
        $region13: #{tpu_custom_call.1} parent=11 // pred_check
          %p283 = pneg %p69
        $region14: #{tpu_custom_call.1} parent=11 // pred_check_branch
          %285 = sbr.rel (%p283) target = $region16
        $region15: #{tpu_custom_call.1} parent=11 // pred_region
          _
        $region16: #{tpu_custom_call.1} parent=11 // pred_fallthru
          _
        // Predicated region
        $region17: #{tpu_custom_call.1} parent=11 // pred_check
          %p286 = pneg %p90
        $region18: #{tpu_custom_call.1} parent=11 // pred_check_branch
          %288 = sbr.rel (%p286) target = $region20
        $region19: #{tpu_custom_call.1} parent=11 // pred_region
          _
        $region20: #{tpu_custom_call.1} parent=11 // pred_fallthru
          _
        // Predicated region
        $region21: #{tpu_custom_call.1} parent=11 // pred_check
          %p289 = pneg %p111
        $region22: #{tpu_custom_call.1} parent=11 // pred_check_branch
          %291 = sbr.rel (%p289) target = $region24
        $region23: #{tpu_custom_call.1} parent=11 // pred_region
          _
        $region24: #{tpu_custom_call.1} parent=11 // pred_fallthru
          _
        // Predicated region
        $region25: #{tpu_custom_call.1} parent=11 // pred_check
          %p292 = pneg %p132
        $region26: #{tpu_custom_call.1} parent=11 // pred_check_branch
          %294 = sbr.rel (%p292) target = $region28
        $region27: #{tpu_custom_call.1} parent=11 // pred_region
          _
        $region28: #{tpu_custom_call.1} parent=11 // pred_fallthru
          _
        // Predicated region
        $region29: #{tpu_custom_call.1} parent=11 // pred_check
          %p295 = pneg %p153
        $region30: #{tpu_custom_call.1} parent=11 // pred_check_branch
          %297 = sbr.rel (%p295) target = $region32
        $region31: #{tpu_custom_call.1} parent=11 // pred_region
          _
        $region32: #{tpu_custom_call.1} parent=11 // pred_fallthru
          _
        // Predicated region
        $region33: #{tpu_custom_call.1} parent=11 // pred_check
          %p298 = pneg %p174
        $region34: #{tpu_custom_call.1} parent=11 // pred_check_branch
          %300 = sbr.rel (%p298) target = $region36
        $region35: #{tpu_custom_call.1} parent=11 // pred_region
          _
        $region36: #{tpu_custom_call.1} parent=11 // pred_fallthru
          _
        // Predicated region
        $region37: #{tpu_custom_call.1} parent=11 // pred_check
          %p301 = pneg %p195
        $region38: #{tpu_custom_call.1} parent=11 // pred_check_branch
          %303 = sbr.rel (%p301) target = $region40
        $region39: #{tpu_custom_call.1} parent=11 // pred_region
          _
        $region40: #{tpu_custom_call.1} parent=11 // pred_fallthru
          _
        // Predicated region
        $region41: #{tpu_custom_call.1} parent=11 // pred_check
          %p304 = pneg %p216
        $region42: #{tpu_custom_call.1} parent=11 // pred_check_branch
          %306 = sbr.rel (%p304) target = $region44
        $region43: #{tpu_custom_call.1} parent=11 // pred_region
          _
        $region44: #{tpu_custom_call.1} parent=11 // pred_fallthru
          _
      $region12: #{tpu_custom_call.1} parent=5 // pred_fallthru
        _
      %p307 = scmp.lt.s32.totalorder %s22, 3
      // Predicated region
      $region45: #{tpu_custom_call.1} parent=5 // pred_check
        %p308 = pneg %p307
      $region46: #{tpu_custom_call.1} parent=5 // pred_check_branch
        %310 = sbr.rel (%p308) target = $region48
      $region47: #{tpu_custom_call.1} parent=5 // pred_region
        // Predicated region
        $region49: #{tpu_custom_call.1} parent=47 // pred_check
          %p311 = pneg %p42
        $region50: #{tpu_custom_call.1} parent=47 // pred_check_branch
          %313 = sbr.rel (%p311) target = $region52
        $region51: #{tpu_custom_call.1} parent=47 // pred_region
          %s314 = smul.u32 16, %s22
          %p315 = scmp.lt.s32.totalorder %s314, 47
          %s316 = scalar_select %p315, %s314, 47
          %s317 = smul.addr %s316, 8
          %s318 = scalar_lea.vmem %s0, %s317
          %s319 = smul.u32 16, %s22
        $region52: #{tpu_custom_call.1} parent=47 // pred_fallthru
          _
      $region48: #{tpu_custom_call.1} parent=5 // pred_fallthru
        _
      %p320 = scmp.le.s32.totalorder 1, %s22
      %p321 = scmp.lt.s32.totalorder %s22, 4
      %p322 = pnand %p320, %p321
      %p323 = pneg %p322
      // Predicated region
      $region53: #{tpu_custom_call.1} parent=5 // pred_check
        _
      $region54: #{tpu_custom_call.1} parent=5 // pred_check_branch
        %325 = sbr.rel (%p322) target = $region56
      $region55: #{tpu_custom_call.1} parent=5 // pred_region
        %s326 = ssub.s32 %s22, 1
        %s327 = smul.u32 16, %s27
        %p328 = scmp.lt.s32.totalorder %s327, 47
        %s329 = scalar_select %p328, %s327, 47
        %s330 = smul.addr %s329, 8
        %s331 = scalar_lea.vmem %s0, %s330
        %p332 = pneg %p48
        %p333 = pneg %p45
        %p334 = pneg %p69
        %p335 = pneg %p66
        %p336 = pneg %p90
        %p337 = pneg %p87
        %p338 = pneg %p111
        %p339 = pneg %p108
        %p340 = pneg %p132
        %p341 = pneg %p129
        %p342 = pneg %p153
        %p343 = pneg %p150
        %p344 = pneg %p174
        %p345 = pneg %p171
        %p346 = pneg %p195
        %p347 = pneg %p192
        %p348 = pneg %p216
        %p349 = pneg %p213
        %p350 = pneg %p242
        %p351 = pneg %p239
        %s352 = smul.u32 16, %s27
        %p353 = scmp.lt.s32.totalorder %s352, 47
        %s354 = scalar_select %p353, %s352, 47
        %s355 = smul.addr %s354, 8
        %s356 = scalar_lea.vmem %s9, %s355
        %p357 = pneg %p268
        %p358 = pneg %p265
        %s359 = sand.u32 %s255, 1
        %s360 = scalar_lea.sflag [#allocation4], %s359
        %s361 = sand.u32 %s255, 1
        %s362 = smul.addr %s361, 128
        %s363 = scalar_lea.vmem [#allocation3], %s362
        %s364 = smul.u32 16, %s27
        %p365 = scmp.lt.s32.totalorder %s364, 47
        %s366 = scalar_select %p365, %s364, 47
        %s367 = smul.addr %s366, 8
        %s368 = scalar_lea.vmem %s0, %s367
        %s369 = smul.u32 16, %s27
        %s370 = smul.u32 16, %s27
        %p371 = scmp.lt.s32.totalorder %s370, 47
        %s372 = scalar_select %p371, %s370, 47
        %s373 = smul.addr %s372, 8
        %s374 = scalar_lea.vmem %s9, %s373
        %s375 = smul.u32 16, %s27
        %s376 = smul.u32 16, %s27
        %v377 = vld [vmem:[%s368] sm:$0xff]
        %v378 = vld [vmem:[%s368 + $0x8] sm:$0xff]
        %v379 = vld [vmem:[%s368 + $0x10] sm:$0xff]
        %v380 = vld [vmem:[%s368 + $0x18] sm:$0xff]
        %v381 = vld [vmem:[%s368 + $0x20] sm:$0xff]
        %v382 = vld [vmem:[%s368 + $0x28] sm:$0xff]
        %v383 = vld [vmem:[%s368 + $0x30] sm:$0xff]
        %v384 = vld [vmem:[%s368 + $0x38] sm:$0xff]
        %v385 = vld [vmem:[%s368 + $0x40] sm:$0xff]
        %v386 = vld [vmem:[%s368 + $0x48] sm:$0xff]
        %v387 = vld [vmem:[%s368 + $0x50] sm:$0xff]
        %v388 = vld [vmem:[%s368 + $0x58] sm:$0xff]
        %v389 = vld [vmem:[%s368 + $0x60] sm:$0xff]
        %v390 = vld [vmem:[%s368 + $0x68] sm:$0xff]
        %v391 = vld [vmem:[%s368 + $0x70] sm:$0xff]
        %v392 = vld [vmem:[%s368 + $0x78] sm:$0xff]
        %v393 = vld [vmem:[%s1] sm:$0x1]
        %v394 = vld [vmem:[%s2] sm:$0x1]
        %v396 = vperm.slane %v394, 0
        %vm398 = vcmask 7168
        %v400 = vsel %vm398, %v377, 0
        %v403 = vsel %vm398, %v378, 0
        %v406 = vsel %vm398, %v379, 0
        %v409 = vsel %vm398, %v380, 0
        %v412 = vsel %vm398, %v381, 0
        %v415 = vsel %vm398, %v382, 0
        %v418 = vsel %vm398, %v383, 0
        %v421 = vsel %vm398, %v384, 0
        %v424 = vsel %vm398, %v385, 0
        %v427 = vsel %vm398, %v386, 0
        %v430 = vsel %vm398, %v387, 0
        %v433 = vsel %vm398, %v388, 0
        %v436 = vsel %vm398, %v389, 0
        %v439 = vsel %vm398, %v390, 0
        %v442 = vsel %vm398, %v391, 0
        %v445 = vsel %vm398, %v392, 0
        %vm447 = vcmask 1040384
        %v449 = vsel %vm447, %v393, 0
        %451 = vmatpush.msra.mxu0 0.0
        %452 = vmatpush.msra.mxu0 0.0
        %453 = vmatpush.msra.mxu0 0.0
        %454 = vmatpush.msra.mxu0 0.0
        %455 = vmatpush.msra.mxu0 0.0
        %456 = vmatpush.msra.mxu0 0.0
        %457 = vmatpush.msra.mxu0 0.0
        %458 = vmatpush.msra.mxu0 0.0
        %459 = vmatpush.msra.mxu0 0.0
        %460 = vmatpush.msra.mxu0 0.0
        %461 = vmatpush.msra.mxu0 0.0
        %462 = vmatpush.msra.mxu0 0.0
        %463 = vmatpush.msra.mxu0 0.0
        %464 = vmatpush.msra.mxu0 0.0
        %465 = vmatpush.msra.mxu0 0.0
        %466 = vmatpush.msra.mxu0 %v449
        %467 = vmatmul.f32.gmra.mxu0 %v400
        %v468 = vpop.f32.mrf.mxu0
        %v469 = vadd.f32 %v396, %v468
        %470 = vmatmul.f32.gmra.mxu0 %v403
        %v471 = vpop.f32.mrf.mxu0
        %v472 = vadd.f32 %v396, %v471
        %473 = vmatmul.f32.gmra.mxu0 %v406
        %v474 = vpop.f32.mrf.mxu0
        %v475 = vadd.f32 %v396, %v474
        %476 = vmatmul.f32.gmra.mxu0 %v409
        %v477 = vpop.f32.mrf.mxu0
        %v478 = vadd.f32 %v396, %v477
        %479 = vmatmul.f32.gmra.mxu0 %v412
        %v480 = vpop.f32.mrf.mxu0
        %v481 = vadd.f32 %v396, %v480
        %482 = vmatmul.f32.gmra.mxu0 %v415
        %v483 = vpop.f32.mrf.mxu0
        %v484 = vadd.f32 %v396, %v483
        %485 = vmatmul.f32.gmra.mxu0 %v418
        %v486 = vpop.f32.mrf.mxu0
        %v487 = vadd.f32 %v396, %v486
        %488 = vmatmul.f32.gmra.mxu0 %v421
        %v489 = vpop.f32.mrf.mxu0
        %v490 = vadd.f32 %v396, %v489
        %491 = vmatmul.f32.gmra.mxu0 %v424
        %v492 = vpop.f32.mrf.mxu0
        %v493 = vadd.f32 %v396, %v492
        %494 = vmatmul.f32.gmra.mxu0 %v427
        %v495 = vpop.f32.mrf.mxu0
        %v496 = vadd.f32 %v396, %v495
        %497 = vmatmul.f32.gmra.mxu0 %v430
        %v498 = vpop.f32.mrf.mxu0
        %v499 = vadd.f32 %v396, %v498
        %500 = vmatmul.f32.gmra.mxu0 %v433
        %v501 = vpop.f32.mrf.mxu0
        %v502 = vadd.f32 %v396, %v501
        %503 = vmatmul.f32.gmra.mxu0 %v436
        %v504 = vpop.f32.mrf.mxu0
        %v505 = vadd.f32 %v396, %v504
        %506 = vmatmul.f32.gmra.mxu0 %v439
        %v507 = vpop.f32.mrf.mxu0
        %v508 = vadd.f32 %v396, %v507
        %509 = vmatmul.f32.gmra.mxu0 %v442
        %v510 = vpop.f32.mrf.mxu0
        %v511 = vadd.f32 %v396, %v510
        %512 = vmatmul.f32.gmra.mxu0 %v445
        %v513 = vpop.f32.mrf.mxu0
        %v514 = vadd.f32 %v396, %v513
        %515 = vdwg.mxu0
        %v516 = vld [vmem:[%s3] sm:$0xff]
        %v517 = vld [vmem:[%s3 + $0x8] sm:$0xff]
        %v518 = vld [vmem:[%s3 + $0x10] sm:$0xff]
        %v519 = vld [vmem:[%s3 + $0x18] sm:$0xff]
        %v520 = vld [vmem:[%s4] sm:$0x1]
        %v522 = vperm.slane %v520, 0
        %vm524 = vcmask 261120
        %v526 = vsel %vm524, %v469, 0
        %v529 = vsel %vm524, %v472, 0
        %v532 = vsel %vm524, %v475, 0
        %v535 = vsel %vm524, %v478, 0
        %v538 = vsel %vm524, %v481, 0
        %v541 = vsel %vm524, %v484, 0
        %v544 = vsel %vm524, %v487, 0
        %v547 = vsel %vm524, %v490, 0
        %v550 = vsel %vm524, %v493, 0
        %v553 = vsel %vm524, %v496, 0
        %v556 = vsel %vm524, %v499, 0
        %v559 = vsel %vm524, %v502, 0
        %v562 = vsel %vm524, %v505, 0
        %v565 = vsel %vm524, %v508, 0
        %v568 = vsel %vm524, %v511, 0
        %v571 = vsel %vm524, %v514, 0
        %573 = vmatpush.msra.mxu0 0.0
        %574 = vmatpush.msra.mxu0 0.0
        %575 = vmatpush.msra.mxu0 0.0
        %576 = vmatpush.msra.mxu0 0.0
        %577 = vmatpush.msra.mxu0 0.0
        %578 = vmatpush.msra.mxu0 0.0
        %579 = vmatpush.msra.mxu0 0.0
        %580 = vmatpush.msra.mxu0 0.0
        %581 = vmatpush.msra.mxu0 0.0
        %582 = vmatpush.msra.mxu0 0.0
        %583 = vmatpush.msra.mxu0 0.0
        %584 = vmatpush.msra.mxu0 0.0
        %585 = vmatpush.msra.mxu0 %v519
        %586 = vmatpush.msra.mxu0 %v518
        %587 = vmatpush.msra.mxu0 %v517
        %588 = vmatpush.msra.mxu0 %v516
        %589 = vmatmul.f32.gmra.mxu0 %v526
        %v590 = vpop.f32.mrf.mxu0
        %v591 = vadd.f32 %v522, %v590
        %592 = vmatmul.f32.gmra.mxu0 %v529
        %v593 = vpop.f32.mrf.mxu0
        %v594 = vadd.f32 %v522, %v593
        %595 = vmatmul.f32.gmra.mxu0 %v532
        %v596 = vpop.f32.mrf.mxu0
        %v597 = vadd.f32 %v522, %v596
        %598 = vmatmul.f32.gmra.mxu0 %v535
        %v599 = vpop.f32.mrf.mxu0
        %v600 = vadd.f32 %v522, %v599
        %601 = vmatmul.f32.gmra.mxu0 %v538
        %v602 = vpop.f32.mrf.mxu0
        %v603 = vadd.f32 %v522, %v602
        %604 = vmatmul.f32.gmra.mxu0 %v541
        %v605 = vpop.f32.mrf.mxu0
        %v606 = vadd.f32 %v522, %v605
        %607 = vmatmul.f32.gmra.mxu0 %v544
        %v608 = vpop.f32.mrf.mxu0
        %v609 = vadd.f32 %v522, %v608
        %610 = vmatmul.f32.gmra.mxu0 %v547
        %v611 = vpop.f32.mrf.mxu0
        %v612 = vadd.f32 %v522, %v611
        %613 = vmatmul.f32.gmra.mxu0 %v550
        %v614 = vpop.f32.mrf.mxu0
        %v615 = vadd.f32 %v522, %v614
        %616 = vmatmul.f32.gmra.mxu0 %v553
        %v617 = vpop.f32.mrf.mxu0
        %v618 = vadd.f32 %v522, %v617
        %619 = vmatmul.f32.gmra.mxu0 %v556
        %v620 = vpop.f32.mrf.mxu0
        %v621 = vadd.f32 %v522, %v620
        %622 = vmatmul.f32.gmra.mxu0 %v559
        %v623 = vpop.f32.mrf.mxu0
        %v624 = vadd.f32 %v522, %v623
        %625 = vmatmul.f32.gmra.mxu0 %v562
        %v626 = vpop.f32.mrf.mxu0
        %v627 = vadd.f32 %v522, %v626
        %628 = vmatmul.f32.gmra.mxu0 %v565
        %v629 = vpop.f32.mrf.mxu0
        %v630 = vadd.f32 %v522, %v629
        %631 = vmatmul.f32.gmra.mxu0 %v568
        %v632 = vpop.f32.mrf.mxu0
        %v633 = vadd.f32 %v522, %v632
        %634 = vmatmul.f32.gmra.mxu0 %v571
        %v635 = vpop.f32.mrf.mxu0
        %v636 = vadd.f32 %v522, %v635
        %637 = vdwg.mxu0
        %v638 = vxor.u32 %v591, 2147483648
        %v639 = vxor.u32 %v594, 2147483648
        %v640 = vxor.u32 %v597, 2147483648
        %v641 = vxor.u32 %v600, 2147483648
        %v642 = vxor.u32 %v603, 2147483648
        %v643 = vxor.u32 %v606, 2147483648
        %v644 = vxor.u32 %v609, 2147483648
        %v645 = vxor.u32 %v612, 2147483648
        %v646 = vxor.u32 %v615, 2147483648
        %v647 = vxor.u32 %v618, 2147483648
        %v648 = vxor.u32 %v621, 2147483648
        %v649 = vxor.u32 %v624, 2147483648
        %v650 = vxor.u32 %v627, 2147483648
        %v651 = vxor.u32 %v630, 2147483648
        %v652 = vxor.u32 %v633, 2147483648
        %v653 = vxor.u32 %v636, 2147483648
        %v654 = vmul.f32 %v638, 1.442695
        %v655 = vpow.pop %v654
        %v656 = vmul.f32 %v639, 1.442695
        %v657 = vpow.pop %v656
        %v658 = vmul.f32 %v640, 1.442695
        %v659 = vpow.pop %v658
        %v660 = vmul.f32 %v641, 1.442695
        %v661 = vpow.pop %v660
        %v662 = vmul.f32 %v642, 1.442695
        %v663 = vpow.pop %v662
        %v664 = vmul.f32 %v643, 1.442695
        %v665 = vpow.pop %v664
        %v666 = vmul.f32 %v644, 1.442695
        %v667 = vpow.pop %v666
        %v668 = vmul.f32 %v645, 1.442695
        %v669 = vpow.pop %v668
        %v670 = vmul.f32 %v646, 1.442695
        %v671 = vpow.pop %v670
        %v672 = vmul.f32 %v647, 1.442695
        %v673 = vpow.pop %v672
        %v674 = vmul.f32 %v648, 1.442695
        %v675 = vpow.pop %v674
        %v676 = vmul.f32 %v649, 1.442695
        %v677 = vpow.pop %v676
        %v678 = vmul.f32 %v650, 1.442695
        %v679 = vpow.pop %v678
        %v680 = vmul.f32 %v651, 1.442695
        %v681 = vpow.pop %v680
        %v682 = vmul.f32 %v652, 1.442695
        %v683 = vpow.pop %v682
        %v684 = vmul.f32 %v653, 1.442695
        %v685 = vpow.pop %v684
        %v686 = vadd.f32 %v655, 1.0
        %v687 = vadd.f32 %v657, 1.0
        %v688 = vadd.f32 %v659, 1.0
        %v689 = vadd.f32 %v661, 1.0
        %v690 = vadd.f32 %v663, 1.0
        %v691 = vadd.f32 %v665, 1.0
        %v692 = vadd.f32 %v667, 1.0
        %v693 = vadd.f32 %v669, 1.0
        %v694 = vadd.f32 %v671, 1.0
        %v695 = vadd.f32 %v673, 1.0
        %v696 = vadd.f32 %v675, 1.0
        %v697 = vadd.f32 %v677, 1.0
        %v698 = vadd.f32 %v679, 1.0
        %v699 = vadd.f32 %v681, 1.0
        %v700 = vadd.f32 %v683, 1.0
        %v701 = vadd.f32 %v685, 1.0
        %v702 = vrcp.pop %v686
        %v703 = vmul.f32 %v686, %v702
        %v704 = vsub.f32 1.0, %v703
        %v705 = vmul.f32 %v702, %v704
        %v706 = vadd.f32 %v702, %v705
        %vm707 = vweird.f32 %v686
        %vm708 = vweird.f32 %v702
        %vm709 = vmor %vm707, %vm708
        %v710 = vsel %vm709, %v702, %v706
        %v711 = vand.u32 2147483647, %v686
        %vm712 = vcmp.eq.f32.partialorder %v711, 8.507059e+37
        %v713 = vand.u32 %v686, 2147483648
        %v714 = vor.u32 1.1754944e-38, %v713
        %v715 = vsel %vm712, %v714, %v710
        %v716 = vmul.f32 1.0, %v715
        %v717 = vrcp.pop %v687
        %v718 = vmul.f32 %v687, %v717
        %v719 = vsub.f32 1.0, %v718
        %v720 = vmul.f32 %v717, %v719
        %v721 = vadd.f32 %v717, %v720
        %vm722 = vweird.f32 %v687
        %vm723 = vweird.f32 %v717
        %vm724 = vmor %vm722, %vm723
        %v725 = vsel %vm724, %v717, %v721
        %v726 = vand.u32 2147483647, %v687
        %vm727 = vcmp.eq.f32.partialorder %v726, 8.507059e+37
        %v728 = vand.u32 %v687, 2147483648
        %v729 = vor.u32 1.1754944e-38, %v728
        %v730 = vsel %vm727, %v729, %v725
        %v731 = vmul.f32 1.0, %v730
        %v732 = vrcp.pop %v688
        %v733 = vmul.f32 %v688, %v732
        %v734 = vsub.f32 1.0, %v733
        %v735 = vmul.f32 %v732, %v734
        %v736 = vadd.f32 %v732, %v735
        %vm737 = vweird.f32 %v688
        %vm738 = vweird.f32 %v732
        %vm739 = vmor %vm737, %vm738
        %v740 = vsel %vm739, %v732, %v736
        %v741 = vand.u32 2147483647, %v688
        %vm742 = vcmp.eq.f32.partialorder %v741, 8.507059e+37
        %v743 = vand.u32 %v688, 2147483648
        %v744 = vor.u32 1.1754944e-38, %v743
        %v745 = vsel %vm742, %v744, %v740
        %v746 = vmul.f32 1.0, %v745
        %v747 = vrcp.pop %v689
        %v748 = vmul.f32 %v689, %v747
        %v749 = vsub.f32 1.0, %v748
        %v750 = vmul.f32 %v747, %v749
        %v751 = vadd.f32 %v747, %v750
        %vm752 = vweird.f32 %v689
        %vm753 = vweird.f32 %v747
        %vm754 = vmor %vm752, %vm753
        %v755 = vsel %vm754, %v747, %v751
        %v756 = vand.u32 2147483647, %v689
        %vm757 = vcmp.eq.f32.partialorder %v756, 8.507059e+37
        %v758 = vand.u32 %v689, 2147483648
        %v759 = vor.u32 1.1754944e-38, %v758
        %v760 = vsel %vm757, %v759, %v755
        %v761 = vmul.f32 1.0, %v760
        %v762 = vrcp.pop %v690
        %v763 = vmul.f32 %v690, %v762
        %v764 = vsub.f32 1.0, %v763
        %v765 = vmul.f32 %v762, %v764
        %v766 = vadd.f32 %v762, %v765
        %vm767 = vweird.f32 %v690
        %vm768 = vweird.f32 %v762
        %vm769 = vmor %vm767, %vm768
        %v770 = vsel %vm769, %v762, %v766
        %v771 = vand.u32 2147483647, %v690
        %vm772 = vcmp.eq.f32.partialorder %v771, 8.507059e+37
        %v773 = vand.u32 %v690, 2147483648
        %v774 = vor.u32 1.1754944e-38, %v773
        %v775 = vsel %vm772, %v774, %v770
        %v776 = vmul.f32 1.0, %v775
        %v777 = vrcp.pop %v691
        %v778 = vmul.f32 %v691, %v777
        %v779 = vsub.f32 1.0, %v778
        %v780 = vmul.f32 %v777, %v779
        %v781 = vadd.f32 %v777, %v780
        %vm782 = vweird.f32 %v691
        %vm783 = vweird.f32 %v777
        %vm784 = vmor %vm782, %vm783
        %v785 = vsel %vm784, %v777, %v781
        %v786 = vand.u32 2147483647, %v691
        %vm787 = vcmp.eq.f32.partialorder %v786, 8.507059e+37
        %v788 = vand.u32 %v691, 2147483648
        %v789 = vor.u32 1.1754944e-38, %v788
        %v790 = vsel %vm787, %v789, %v785
        %v791 = vmul.f32 1.0, %v790
        %v792 = vrcp.pop %v692
        %v793 = vmul.f32 %v692, %v792
        %v794 = vsub.f32 1.0, %v793
        %v795 = vmul.f32 %v792, %v794
        %v796 = vadd.f32 %v792, %v795
        %vm797 = vweird.f32 %v692
        %vm798 = vweird.f32 %v792
        %vm799 = vmor %vm797, %vm798
        %v800 = vsel %vm799, %v792, %v796
        %v801 = vand.u32 2147483647, %v692
        %vm802 = vcmp.eq.f32.partialorder %v801, 8.507059e+37
        %v803 = vand.u32 %v692, 2147483648
        %v804 = vor.u32 1.1754944e-38, %v803
        %v805 = vsel %vm802, %v804, %v800
        %v806 = vmul.f32 1.0, %v805
        %v807 = vrcp.pop %v693
        %v808 = vmul.f32 %v693, %v807
        %v809 = vsub.f32 1.0, %v808
        %v810 = vmul.f32 %v807, %v809
        %v811 = vadd.f32 %v807, %v810
        %vm812 = vweird.f32 %v693
        %vm813 = vweird.f32 %v807
        %vm814 = vmor %vm812, %vm813
        %v815 = vsel %vm814, %v807, %v811
        %v816 = vand.u32 2147483647, %v693
        %vm817 = vcmp.eq.f32.partialorder %v816, 8.507059e+37
        %v818 = vand.u32 %v693, 2147483648
        %v819 = vor.u32 1.1754944e-38, %v818
        %v820 = vsel %vm817, %v819, %v815
        %v821 = vmul.f32 1.0, %v820
        %v822 = vrcp.pop %v694
        %v823 = vmul.f32 %v694, %v822
        %v824 = vsub.f32 1.0, %v823
        %v825 = vmul.f32 %v822, %v824
        %v826 = vadd.f32 %v822, %v825
        %vm827 = vweird.f32 %v694
        %vm828 = vweird.f32 %v822
        %vm829 = vmor %vm827, %vm828
        %v830 = vsel %vm829, %v822, %v826
        %v831 = vand.u32 2147483647, %v694
        %vm832 = vcmp.eq.f32.partialorder %v831, 8.507059e+37
        %v833 = vand.u32 %v694, 2147483648
        %v834 = vor.u32 1.1754944e-38, %v833
        %v835 = vsel %vm832, %v834, %v830
        %v836 = vmul.f32 1.0, %v835
        %v837 = vrcp.pop %v695
        %v838 = vmul.f32 %v695, %v837
        %v839 = vsub.f32 1.0, %v838
        %v840 = vmul.f32 %v837, %v839
        %v841 = vadd.f32 %v837, %v840
        %vm842 = vweird.f32 %v695
        %vm843 = vweird.f32 %v837
        %vm844 = vmor %vm842, %vm843
        %v845 = vsel %vm844, %v837, %v841
        %v846 = vand.u32 2147483647, %v695
        %vm847 = vcmp.eq.f32.partialorder %v846, 8.507059e+37
        %v848 = vand.u32 %v695, 2147483648
        %v849 = vor.u32 1.1754944e-38, %v848
        %v850 = vsel %vm847, %v849, %v845
        %v851 = vmul.f32 1.0, %v850
        %v852 = vrcp.pop %v696
        %v853 = vmul.f32 %v696, %v852
        %v854 = vsub.f32 1.0, %v853
        %v855 = vmul.f32 %v852, %v854
        %v856 = vadd.f32 %v852, %v855
        %vm857 = vweird.f32 %v696
        %vm858 = vweird.f32 %v852
        %vm859 = vmor %vm857, %vm858
        %v860 = vsel %vm859, %v852, %v856
        %v861 = vand.u32 2147483647, %v696
        %vm862 = vcmp.eq.f32.partialorder %v861, 8.507059e+37
        %v863 = vand.u32 %v696, 2147483648
        %v864 = vor.u32 1.1754944e-38, %v863
        %v865 = vsel %vm862, %v864, %v860
        %v866 = vmul.f32 1.0, %v865
        %v867 = vrcp.pop %v697
        %v868 = vmul.f32 %v697, %v867
        %v869 = vsub.f32 1.0, %v868
        %v870 = vmul.f32 %v867, %v869
        %v871 = vadd.f32 %v867, %v870
        %vm872 = vweird.f32 %v697
        %vm873 = vweird.f32 %v867
        %vm874 = vmor %vm872, %vm873
        %v875 = vsel %vm874, %v867, %v871
        %v876 = vand.u32 2147483647, %v697
        %vm877 = vcmp.eq.f32.partialorder %v876, 8.507059e+37
        %v878 = vand.u32 %v697, 2147483648
        %v879 = vor.u32 1.1754944e-38, %v878
        %v880 = vsel %vm877, %v879, %v875
        %v881 = vmul.f32 1.0, %v880
        %v882 = vrcp.pop %v698
        %v883 = vmul.f32 %v698, %v882
        %v884 = vsub.f32 1.0, %v883
        %v885 = vmul.f32 %v882, %v884
        %v886 = vadd.f32 %v882, %v885
        %vm887 = vweird.f32 %v698
        %vm888 = vweird.f32 %v882
        %vm889 = vmor %vm887, %vm888
        %v890 = vsel %vm889, %v882, %v886
        %v891 = vand.u32 2147483647, %v698
        %vm892 = vcmp.eq.f32.partialorder %v891, 8.507059e+37
        %v893 = vand.u32 %v698, 2147483648
        %v894 = vor.u32 1.1754944e-38, %v893
        %v895 = vsel %vm892, %v894, %v890
        %v896 = vmul.f32 1.0, %v895
        %v897 = vrcp.pop %v699
        %v898 = vmul.f32 %v699, %v897
        %v899 = vsub.f32 1.0, %v898
        %v900 = vmul.f32 %v897, %v899
        %v901 = vadd.f32 %v897, %v900
        %vm902 = vweird.f32 %v699
        %vm903 = vweird.f32 %v897
        %vm904 = vmor %vm902, %vm903
        %v905 = vsel %vm904, %v897, %v901
        %v906 = vand.u32 2147483647, %v699
        %vm907 = vcmp.eq.f32.partialorder %v906, 8.507059e+37
        %v908 = vand.u32 %v699, 2147483648
        %v909 = vor.u32 1.1754944e-38, %v908
        %v910 = vsel %vm907, %v909, %v905
        %v911 = vmul.f32 1.0, %v910
        %v912 = vrcp.pop %v700
        %v913 = vmul.f32 %v700, %v912
        %v914 = vsub.f32 1.0, %v913
        %v915 = vmul.f32 %v912, %v914
        %v916 = vadd.f32 %v912, %v915
        %vm917 = vweird.f32 %v700
        %vm918 = vweird.f32 %v912
        %vm919 = vmor %vm917, %vm918
        %v920 = vsel %vm919, %v912, %v916
        %v921 = vand.u32 2147483647, %v700
        %vm922 = vcmp.eq.f32.partialorder %v921, 8.507059e+37
        %v923 = vand.u32 %v700, 2147483648
        %v924 = vor.u32 1.1754944e-38, %v923
        %v925 = vsel %vm922, %v924, %v920
        %v926 = vmul.f32 1.0, %v925
        %v927 = vrcp.pop %v701
        %v928 = vmul.f32 %v701, %v927
        %v929 = vsub.f32 1.0, %v928
        %v930 = vmul.f32 %v927, %v929
        %v931 = vadd.f32 %v927, %v930
        %vm932 = vweird.f32 %v701
        %vm933 = vweird.f32 %v927
        %vm934 = vmor %vm932, %vm933
        %v935 = vsel %vm934, %v927, %v931
        %v936 = vand.u32 2147483647, %v701
        %vm937 = vcmp.eq.f32.partialorder %v936, 8.507059e+37
        %v938 = vand.u32 %v701, 2147483648
        %v939 = vor.u32 1.1754944e-38, %v938
        %v940 = vsel %vm937, %v939, %v935
        %v941 = vmul.f32 1.0, %v940
        %v942 = vtanh.pop %v591
        %v943 = vtanh.pop %v594
        %v944 = vtanh.pop %v597
        %v945 = vtanh.pop %v600
        %v946 = vtanh.pop %v603
        %v947 = vtanh.pop %v606
        %v948 = vtanh.pop %v609
        %v949 = vtanh.pop %v612
        %v950 = vtanh.pop %v615
        %v951 = vtanh.pop %v618
        %v952 = vtanh.pop %v621
        %v953 = vtanh.pop %v624
        %v954 = vtanh.pop %v627
        %v955 = vtanh.pop %v630
        %v956 = vtanh.pop %v633
        %v957 = vtanh.pop %v636
        %974 = vrot.lane.b32.xlu0 %v942, 32
        %v975 = vpop.permute.xlu0 %974
        %976 = vrot.lane.b32.xlu0 %v943, 32
        %v977 = vpop.permute.xlu0 %976
        %978 = vrot.lane.b32.xlu0 %v944, 32
        %v979 = vpop.permute.xlu0 %978
        %980 = vrot.lane.b32.xlu0 %v945, 32
        %v981 = vpop.permute.xlu0 %980
        %982 = vrot.lane.b32.xlu0 %v946, 32
        %v983 = vpop.permute.xlu0 %982
        %984 = vrot.lane.b32.xlu0 %v947, 32
        %v985 = vpop.permute.xlu0 %984
        %986 = vrot.lane.b32.xlu0 %v948, 32
        %v987 = vpop.permute.xlu0 %986
        %988 = vrot.lane.b32.xlu0 %v949, 32
        %v989 = vpop.permute.xlu0 %988
        %990 = vrot.lane.b32.xlu0 %v950, 32
        %v991 = vpop.permute.xlu0 %990
        %992 = vrot.lane.b32.xlu0 %v951, 32
        %v993 = vpop.permute.xlu0 %992
        %994 = vrot.lane.b32.xlu0 %v952, 32
        %v995 = vpop.permute.xlu0 %994
        %996 = vrot.lane.b32.xlu0 %v953, 32
        %v997 = vpop.permute.xlu0 %996
        %998 = vrot.lane.b32.xlu0 %v954, 32
        %v999 = vpop.permute.xlu0 %998
        %1000 = vrot.lane.b32.xlu0 %v955, 32
        %v1001 = vpop.permute.xlu0 %1000
        %1002 = vrot.lane.b32.xlu0 %v956, 32
        %v1003 = vpop.permute.xlu0 %1002
        %1004 = vrot.lane.b32.xlu0 %v957, 32
        %v1005 = vpop.permute.xlu0 %1004
        %v1022 = vmul.f32 %v716, %v975
        %v1023 = vmul.f32 %v731, %v977
        %v1024 = vmul.f32 %v746, %v979
        %v1025 = vmul.f32 %v761, %v981
        %v1026 = vmul.f32 %v776, %v983
        %v1027 = vmul.f32 %v791, %v985
        %v1028 = vmul.f32 %v806, %v987
        %v1029 = vmul.f32 %v821, %v989
        %v1030 = vmul.f32 %v836, %v991
        %v1031 = vmul.f32 %v851, %v993
        %v1032 = vmul.f32 %v866, %v995
        %v1033 = vmul.f32 %v881, %v997
        %v1034 = vmul.f32 %v896, %v999
        %v1035 = vmul.f32 %v911, %v1001
        %v1036 = vmul.f32 %v926, %v1003
        %v1037 = vmul.f32 %v941, %v1005
        %v1038 = vtanh.pop %v1022
        %v1039 = vtanh.pop %v1023
        %v1040 = vtanh.pop %v1024
        %v1041 = vtanh.pop %v1025
        %v1042 = vtanh.pop %v1026
        %v1043 = vtanh.pop %v1027
        %v1044 = vtanh.pop %v1028
        %v1045 = vtanh.pop %v1029
        %v1046 = vtanh.pop %v1030
        %v1047 = vtanh.pop %v1031
        %v1048 = vtanh.pop %v1032
        %v1049 = vtanh.pop %v1033
        %v1050 = vtanh.pop %v1034
        %v1051 = vtanh.pop %v1035
        %v1052 = vtanh.pop %v1036
        %v1053 = vtanh.pop %v1037
        %1070 = vrot.lane.b32.xlu0 %v1038, 64
        %v1071 = vpop.permute.xlu0 %1070
        %1072 = vrot.lane.b32.xlu0 %v1039, 64
        %v1073 = vpop.permute.xlu0 %1072
        %1074 = vrot.lane.b32.xlu0 %v1040, 64
        %v1075 = vpop.permute.xlu0 %1074
        %1076 = vrot.lane.b32.xlu0 %v1041, 64
        %v1077 = vpop.permute.xlu0 %1076
        %1078 = vrot.lane.b32.xlu0 %v1042, 64
        %v1079 = vpop.permute.xlu0 %1078
        %1080 = vrot.lane.b32.xlu0 %v1043, 64
        %v1081 = vpop.permute.xlu0 %1080
        %1082 = vrot.lane.b32.xlu0 %v1044, 64
        %v1083 = vpop.permute.xlu0 %1082
        %1084 = vrot.lane.b32.xlu0 %v1045, 64
        %v1085 = vpop.permute.xlu0 %1084
        %1086 = vrot.lane.b32.xlu0 %v1046, 64
        %v1087 = vpop.permute.xlu0 %1086
        %1088 = vrot.lane.b32.xlu0 %v1047, 64
        %v1089 = vpop.permute.xlu0 %1088
        %1090 = vrot.lane.b32.xlu0 %v1048, 64
        %v1091 = vpop.permute.xlu0 %1090
        %1092 = vrot.lane.b32.xlu0 %v1049, 64
        %v1093 = vpop.permute.xlu0 %1092
        %1094 = vrot.lane.b32.xlu0 %v1050, 64
        %v1095 = vpop.permute.xlu0 %1094
        %1096 = vrot.lane.b32.xlu0 %v1051, 64
        %v1097 = vpop.permute.xlu0 %1096
        %1098 = vrot.lane.b32.xlu0 %v1052, 64
        %v1099 = vpop.permute.xlu0 %1098
        %1100 = vrot.lane.b32.xlu0 %v1053, 64
        %v1101 = vpop.permute.xlu0 %1100
        %v1118 = vmul.f32 %v716, %v1071
        %v1119 = vmul.f32 %v731, %v1073
        %v1120 = vmul.f32 %v746, %v1075
        %v1121 = vmul.f32 %v761, %v1077
        %v1122 = vmul.f32 %v776, %v1079
        %v1123 = vmul.f32 %v791, %v1081
        %v1124 = vmul.f32 %v806, %v1083
        %v1125 = vmul.f32 %v821, %v1085
        %v1126 = vmul.f32 %v836, %v1087
        %v1127 = vmul.f32 %v851, %v1089
        %v1128 = vmul.f32 %v866, %v1091
        %v1129 = vmul.f32 %v881, %v1093
        %v1130 = vmul.f32 %v896, %v1095
        %v1131 = vmul.f32 %v911, %v1097
        %v1132 = vmul.f32 %v926, %v1099
        %v1133 = vmul.f32 %v941, %v1101
        %v1134 = vld [vmem:[%s5] sm:$0xff]
        %v1135 = vld [vmem:[%s5 + $0x8] sm:$0xff]
        %v1136 = vld [vmem:[%s5 + $0x10] sm:$0xff]
        %v1137 = vld [vmem:[%s5 + $0x18] sm:$0xff]
        %v1138 = vld [vmem:[%s6] sm:$0x1]
        %v1140 = vperm.slane %v1138, 0
        %1158 = vrot.lane.b32.xlu0 %v1118, 64
        %v1159 = vpop.permute.xlu0 %1158
        %1160 = vrot.lane.b32.xlu0 %v1119, 64
        %v1161 = vpop.permute.xlu0 %1160
        %1162 = vrot.lane.b32.xlu0 %v1120, 64
        %v1163 = vpop.permute.xlu0 %1162
        %1164 = vrot.lane.b32.xlu0 %v1121, 64
        %v1165 = vpop.permute.xlu0 %1164
        %1166 = vrot.lane.b32.xlu0 %v1122, 64
        %v1167 = vpop.permute.xlu0 %1166
        %1168 = vrot.lane.b32.xlu0 %v1123, 64
        %v1169 = vpop.permute.xlu0 %1168
        %1170 = vrot.lane.b32.xlu0 %v1124, 64
        %v1171 = vpop.permute.xlu0 %1170
        %1172 = vrot.lane.b32.xlu0 %v1125, 64
        %v1173 = vpop.permute.xlu0 %1172
        %1174 = vrot.lane.b32.xlu0 %v1126, 64
        %v1175 = vpop.permute.xlu0 %1174
        %1176 = vrot.lane.b32.xlu0 %v1127, 64
        %v1177 = vpop.permute.xlu0 %1176
        %1178 = vrot.lane.b32.xlu0 %v1128, 64
        %v1179 = vpop.permute.xlu0 %1178
        %1180 = vrot.lane.b32.xlu0 %v1129, 64
        %v1181 = vpop.permute.xlu0 %1180
        %1182 = vrot.lane.b32.xlu0 %v1130, 64
        %v1183 = vpop.permute.xlu0 %1182
        %1184 = vrot.lane.b32.xlu0 %v1131, 64
        %v1185 = vpop.permute.xlu0 %1184
        %1186 = vrot.lane.b32.xlu0 %v1132, 64
        %v1187 = vpop.permute.xlu0 %1186
        %1188 = vrot.lane.b32.xlu0 %v1133, 64
        %v1189 = vpop.permute.xlu0 %1188
        %v1190 = vsel %vm524, %v1159, 0
        %v1192 = vsel %vm524, %v1161, 0
        %v1194 = vsel %vm524, %v1163, 0
        %v1196 = vsel %vm524, %v1165, 0
        %v1198 = vsel %vm524, %v1167, 0
        %v1200 = vsel %vm524, %v1169, 0
        %v1202 = vsel %vm524, %v1171, 0
        %v1204 = vsel %vm524, %v1173, 0
        %v1206 = vsel %vm524, %v1175, 0
        %v1208 = vsel %vm524, %v1177, 0
        %v1210 = vsel %vm524, %v1179, 0
        %v1212 = vsel %vm524, %v1181, 0
        %v1214 = vsel %vm524, %v1183, 0
        %v1216 = vsel %vm524, %v1185, 0
        %v1218 = vsel %vm524, %v1187, 0
        %v1220 = vsel %vm524, %v1189, 0
        %1222 = vmatpush.msra.mxu0 0.0
        %1223 = vmatpush.msra.mxu0 0.0
        %1224 = vmatpush.msra.mxu0 0.0
        %1225 = vmatpush.msra.mxu0 0.0
        %1226 = vmatpush.msra.mxu0 0.0
        %1227 = vmatpush.msra.mxu0 0.0
        %1228 = vmatpush.msra.mxu0 0.0
        %1229 = vmatpush.msra.mxu0 0.0
        %1230 = vmatpush.msra.mxu0 0.0
        %1231 = vmatpush.msra.mxu0 0.0
        %1232 = vmatpush.msra.mxu0 0.0
        %1233 = vmatpush.msra.mxu0 0.0
        %1234 = vmatpush.msra.mxu0 %v1137
        %1235 = vmatpush.msra.mxu0 %v1136
        %1236 = vmatpush.msra.mxu0 %v1135
        %1237 = vmatpush.msra.mxu0 %v1134
        %1238 = vmatmul.f32.gmra.mxu0 %v1190
        %v1239 = vpop.f32.mrf.mxu0
        %v1240 = vadd.f32 %v1140, %v1239
        %1241 = vmatmul.f32.gmra.mxu0 %v1192
        %v1242 = vpop.f32.mrf.mxu0
        %v1243 = vadd.f32 %v1140, %v1242
        %1244 = vmatmul.f32.gmra.mxu0 %v1194
        %v1245 = vpop.f32.mrf.mxu0
        %v1246 = vadd.f32 %v1140, %v1245
        %1247 = vmatmul.f32.gmra.mxu0 %v1196
        %v1248 = vpop.f32.mrf.mxu0
        %v1249 = vadd.f32 %v1140, %v1248
        %1250 = vmatmul.f32.gmra.mxu0 %v1198
        %v1251 = vpop.f32.mrf.mxu0
        %v1252 = vadd.f32 %v1140, %v1251
        %1253 = vmatmul.f32.gmra.mxu0 %v1200
        %v1254 = vpop.f32.mrf.mxu0
        %v1255 = vadd.f32 %v1140, %v1254
        %1256 = vmatmul.f32.gmra.mxu0 %v1202
        %v1257 = vpop.f32.mrf.mxu0
        %v1258 = vadd.f32 %v1140, %v1257
        %1259 = vmatmul.f32.gmra.mxu0 %v1204
        %v1260 = vpop.f32.mrf.mxu0
        %v1261 = vadd.f32 %v1140, %v1260
        %1262 = vmatmul.f32.gmra.mxu0 %v1206
        %v1263 = vpop.f32.mrf.mxu0
        %v1264 = vadd.f32 %v1140, %v1263
        %1265 = vmatmul.f32.gmra.mxu0 %v1208
        %v1266 = vpop.f32.mrf.mxu0
        %v1267 = vadd.f32 %v1140, %v1266
        %1268 = vmatmul.f32.gmra.mxu0 %v1210
        %v1269 = vpop.f32.mrf.mxu0
        %v1270 = vadd.f32 %v1140, %v1269
        %1271 = vmatmul.f32.gmra.mxu0 %v1212
        %v1272 = vpop.f32.mrf.mxu0
        %v1273 = vadd.f32 %v1140, %v1272
        %1274 = vmatmul.f32.gmra.mxu0 %v1214
        %v1275 = vpop.f32.mrf.mxu0
        %v1276 = vadd.f32 %v1140, %v1275
        %1277 = vmatmul.f32.gmra.mxu0 %v1216
        %v1278 = vpop.f32.mrf.mxu0
        %v1279 = vadd.f32 %v1140, %v1278
        %1280 = vmatmul.f32.gmra.mxu0 %v1218
        %v1281 = vpop.f32.mrf.mxu0
        %v1282 = vadd.f32 %v1140, %v1281
        %1283 = vmatmul.f32.gmra.mxu0 %v1220
        %v1284 = vpop.f32.mrf.mxu0
        %v1285 = vadd.f32 %v1140, %v1284
        %1286 = vdwg.mxu0
        %v1287 = vxor.u32 %v1240, 2147483648
        %v1288 = vxor.u32 %v1243, 2147483648
        %v1289 = vxor.u32 %v1246, 2147483648
        %v1290 = vxor.u32 %v1249, 2147483648
        %v1291 = vxor.u32 %v1252, 2147483648
        %v1292 = vxor.u32 %v1255, 2147483648
        %v1293 = vxor.u32 %v1258, 2147483648
        %v1294 = vxor.u32 %v1261, 2147483648
        %v1295 = vxor.u32 %v1264, 2147483648
        %v1296 = vxor.u32 %v1267, 2147483648
        %v1297 = vxor.u32 %v1270, 2147483648
        %v1298 = vxor.u32 %v1273, 2147483648
        %v1299 = vxor.u32 %v1276, 2147483648
        %v1300 = vxor.u32 %v1279, 2147483648
        %v1301 = vxor.u32 %v1282, 2147483648
        %v1302 = vxor.u32 %v1285, 2147483648
        %v1303 = vmul.f32 %v1287, 1.442695
        %v1304 = vpow.pop %v1303
        %v1305 = vmul.f32 %v1288, 1.442695
        %v1306 = vpow.pop %v1305
        %v1307 = vmul.f32 %v1289, 1.442695
        %v1308 = vpow.pop %v1307
        %v1309 = vmul.f32 %v1290, 1.442695
        %v1310 = vpow.pop %v1309
        %v1311 = vmul.f32 %v1291, 1.442695
        %v1312 = vpow.pop %v1311
        %v1313 = vmul.f32 %v1292, 1.442695
        %v1314 = vpow.pop %v1313
        %v1315 = vmul.f32 %v1293, 1.442695
        %v1316 = vpow.pop %v1315
        %v1317 = vmul.f32 %v1294, 1.442695
        %v1318 = vpow.pop %v1317
        %v1319 = vmul.f32 %v1295, 1.442695
        %v1320 = vpow.pop %v1319
        %v1321 = vmul.f32 %v1296, 1.442695
        %v1322 = vpow.pop %v1321
        %v1323 = vmul.f32 %v1297, 1.442695
        %v1324 = vpow.pop %v1323
        %v1325 = vmul.f32 %v1298, 1.442695
        %v1326 = vpow.pop %v1325
        %v1327 = vmul.f32 %v1299, 1.442695
        %v1328 = vpow.pop %v1327
        %v1329 = vmul.f32 %v1300, 1.442695
        %v1330 = vpow.pop %v1329
        %v1331 = vmul.f32 %v1301, 1.442695
        %v1332 = vpow.pop %v1331
        %v1333 = vmul.f32 %v1302, 1.442695
        %v1334 = vpow.pop %v1333
        %v1335 = vadd.f32 %v1304, 1.0
        %v1336 = vadd.f32 %v1306, 1.0
        %v1337 = vadd.f32 %v1308, 1.0
        %v1338 = vadd.f32 %v1310, 1.0
        %v1339 = vadd.f32 %v1312, 1.0
        %v1340 = vadd.f32 %v1314, 1.0
        %v1341 = vadd.f32 %v1316, 1.0
        %v1342 = vadd.f32 %v1318, 1.0
        %v1343 = vadd.f32 %v1320, 1.0
        %v1344 = vadd.f32 %v1322, 1.0
        %v1345 = vadd.f32 %v1324, 1.0
        %v1346 = vadd.f32 %v1326, 1.0
        %v1347 = vadd.f32 %v1328, 1.0
        %v1348 = vadd.f32 %v1330, 1.0
        %v1349 = vadd.f32 %v1332, 1.0
        %v1350 = vadd.f32 %v1334, 1.0
        %v1351 = vrcp.pop %v1335
        %v1352 = vmul.f32 %v1335, %v1351
        %v1353 = vsub.f32 1.0, %v1352
        %v1354 = vmul.f32 %v1351, %v1353
        %v1355 = vadd.f32 %v1351, %v1354
        %vm1356 = vweird.f32 %v1335
        %vm1357 = vweird.f32 %v1351
        %vm1358 = vmor %vm1356, %vm1357
        %v1359 = vsel %vm1358, %v1351, %v1355
        %v1360 = vand.u32 2147483647, %v1335
        %vm1361 = vcmp.eq.f32.partialorder %v1360, 8.507059e+37
        %v1362 = vand.u32 %v1335, 2147483648
        %v1363 = vor.u32 1.1754944e-38, %v1362
        %v1364 = vsel %vm1361, %v1363, %v1359
        %v1365 = vmul.f32 1.0, %v1364
        %v1366 = vrcp.pop %v1336
        %v1367 = vmul.f32 %v1336, %v1366
        %v1368 = vsub.f32 1.0, %v1367
        %v1369 = vmul.f32 %v1366, %v1368
        %v1370 = vadd.f32 %v1366, %v1369
        %vm1371 = vweird.f32 %v1336
        %vm1372 = vweird.f32 %v1366
        %vm1373 = vmor %vm1371, %vm1372
        %v1374 = vsel %vm1373, %v1366, %v1370
        %v1375 = vand.u32 2147483647, %v1336
        %vm1376 = vcmp.eq.f32.partialorder %v1375, 8.507059e+37
        %v1377 = vand.u32 %v1336, 2147483648
        %v1378 = vor.u32 1.1754944e-38, %v1377
        %v1379 = vsel %vm1376, %v1378, %v1374
        %v1380 = vmul.f32 1.0, %v1379
        %v1381 = vrcp.pop %v1337
        %v1382 = vmul.f32 %v1337, %v1381
        %v1383 = vsub.f32 1.0, %v1382
        %v1384 = vmul.f32 %v1381, %v1383
        %v1385 = vadd.f32 %v1381, %v1384
        %vm1386 = vweird.f32 %v1337
        %vm1387 = vweird.f32 %v1381
        %vm1388 = vmor %vm1386, %vm1387
        %v1389 = vsel %vm1388, %v1381, %v1385
        %v1390 = vand.u32 2147483647, %v1337
        %vm1391 = vcmp.eq.f32.partialorder %v1390, 8.507059e+37
        %v1392 = vand.u32 %v1337, 2147483648
        %v1393 = vor.u32 1.1754944e-38, %v1392
        %v1394 = vsel %vm1391, %v1393, %v1389
        %v1395 = vmul.f32 1.0, %v1394
        %v1396 = vrcp.pop %v1338
        %v1397 = vmul.f32 %v1338, %v1396
        %v1398 = vsub.f32 1.0, %v1397
        %v1399 = vmul.f32 %v1396, %v1398
        %v1400 = vadd.f32 %v1396, %v1399
        %vm1401 = vweird.f32 %v1338
        %vm1402 = vweird.f32 %v1396
        %vm1403 = vmor %vm1401, %vm1402
        %v1404 = vsel %vm1403, %v1396, %v1400
        %v1405 = vand.u32 2147483647, %v1338
        %vm1406 = vcmp.eq.f32.partialorder %v1405, 8.507059e+37
        %v1407 = vand.u32 %v1338, 2147483648
        %v1408 = vor.u32 1.1754944e-38, %v1407
        %v1409 = vsel %vm1406, %v1408, %v1404
        %v1410 = vmul.f32 1.0, %v1409
        %v1411 = vrcp.pop %v1339
        %v1412 = vmul.f32 %v1339, %v1411
        %v1413 = vsub.f32 1.0, %v1412
        %v1414 = vmul.f32 %v1411, %v1413
        %v1415 = vadd.f32 %v1411, %v1414
        %vm1416 = vweird.f32 %v1339
        %vm1417 = vweird.f32 %v1411
        %vm1418 = vmor %vm1416, %vm1417
        %v1419 = vsel %vm1418, %v1411, %v1415
        %v1420 = vand.u32 2147483647, %v1339
        %vm1421 = vcmp.eq.f32.partialorder %v1420, 8.507059e+37
        %v1422 = vand.u32 %v1339, 2147483648
        %v1423 = vor.u32 1.1754944e-38, %v1422
        %v1424 = vsel %vm1421, %v1423, %v1419
        %v1425 = vmul.f32 1.0, %v1424
        %v1426 = vrcp.pop %v1340
        %v1427 = vmul.f32 %v1340, %v1426
        %v1428 = vsub.f32 1.0, %v1427
        %v1429 = vmul.f32 %v1426, %v1428
        %v1430 = vadd.f32 %v1426, %v1429
        %vm1431 = vweird.f32 %v1340
        %vm1432 = vweird.f32 %v1426
        %vm1433 = vmor %vm1431, %vm1432
        %v1434 = vsel %vm1433, %v1426, %v1430
        %v1435 = vand.u32 2147483647, %v1340
        %vm1436 = vcmp.eq.f32.partialorder %v1435, 8.507059e+37
        %v1437 = vand.u32 %v1340, 2147483648
        %v1438 = vor.u32 1.1754944e-38, %v1437
        %v1439 = vsel %vm1436, %v1438, %v1434
        %v1440 = vmul.f32 1.0, %v1439
        %v1441 = vrcp.pop %v1341
        %v1442 = vmul.f32 %v1341, %v1441
        %v1443 = vsub.f32 1.0, %v1442
        %v1444 = vmul.f32 %v1441, %v1443
        %v1445 = vadd.f32 %v1441, %v1444
        %vm1446 = vweird.f32 %v1341
        %vm1447 = vweird.f32 %v1441
        %vm1448 = vmor %vm1446, %vm1447
        %v1449 = vsel %vm1448, %v1441, %v1445
        %v1450 = vand.u32 2147483647, %v1341
        %vm1451 = vcmp.eq.f32.partialorder %v1450, 8.507059e+37
        %v1452 = vand.u32 %v1341, 2147483648
        %v1453 = vor.u32 1.1754944e-38, %v1452
        %v1454 = vsel %vm1451, %v1453, %v1449
        %v1455 = vmul.f32 1.0, %v1454
        %v1456 = vrcp.pop %v1342
        %v1457 = vmul.f32 %v1342, %v1456
        %v1458 = vsub.f32 1.0, %v1457
        %v1459 = vmul.f32 %v1456, %v1458
        %v1460 = vadd.f32 %v1456, %v1459
        %vm1461 = vweird.f32 %v1342
        %vm1462 = vweird.f32 %v1456
        %vm1463 = vmor %vm1461, %vm1462
        %v1464 = vsel %vm1463, %v1456, %v1460
        %v1465 = vand.u32 2147483647, %v1342
        %vm1466 = vcmp.eq.f32.partialorder %v1465, 8.507059e+37
        %v1467 = vand.u32 %v1342, 2147483648
        %v1468 = vor.u32 1.1754944e-38, %v1467
        %v1469 = vsel %vm1466, %v1468, %v1464
        %v1470 = vmul.f32 1.0, %v1469
        %v1471 = vrcp.pop %v1343
        %v1472 = vmul.f32 %v1343, %v1471
        %v1473 = vsub.f32 1.0, %v1472
        %v1474 = vmul.f32 %v1471, %v1473
        %v1475 = vadd.f32 %v1471, %v1474
        %vm1476 = vweird.f32 %v1343
        %vm1477 = vweird.f32 %v1471
        %vm1478 = vmor %vm1476, %vm1477
        %v1479 = vsel %vm1478, %v1471, %v1475
        %v1480 = vand.u32 2147483647, %v1343
        %vm1481 = vcmp.eq.f32.partialorder %v1480, 8.507059e+37
        %v1482 = vand.u32 %v1343, 2147483648
        %v1483 = vor.u32 1.1754944e-38, %v1482
        %v1484 = vsel %vm1481, %v1483, %v1479
        %v1485 = vmul.f32 1.0, %v1484
        %v1486 = vrcp.pop %v1344
        %v1487 = vmul.f32 %v1344, %v1486
        %v1488 = vsub.f32 1.0, %v1487
        %v1489 = vmul.f32 %v1486, %v1488
        %v1490 = vadd.f32 %v1486, %v1489
        %vm1491 = vweird.f32 %v1344
        %vm1492 = vweird.f32 %v1486
        %vm1493 = vmor %vm1491, %vm1492
        %v1494 = vsel %vm1493, %v1486, %v1490
        %v1495 = vand.u32 2147483647, %v1344
        %vm1496 = vcmp.eq.f32.partialorder %v1495, 8.507059e+37
        %v1497 = vand.u32 %v1344, 2147483648
        %v1498 = vor.u32 1.1754944e-38, %v1497
        %v1499 = vsel %vm1496, %v1498, %v1494
        %v1500 = vmul.f32 1.0, %v1499
        %v1501 = vrcp.pop %v1345
        %v1502 = vmul.f32 %v1345, %v1501
        %v1503 = vsub.f32 1.0, %v1502
        %v1504 = vmul.f32 %v1501, %v1503
        %v1505 = vadd.f32 %v1501, %v1504
        %vm1506 = vweird.f32 %v1345
        %vm1507 = vweird.f32 %v1501
        %vm1508 = vmor %vm1506, %vm1507
        %v1509 = vsel %vm1508, %v1501, %v1505
        %v1510 = vand.u32 2147483647, %v1345
        %vm1511 = vcmp.eq.f32.partialorder %v1510, 8.507059e+37
        %v1512 = vand.u32 %v1345, 2147483648
        %v1513 = vor.u32 1.1754944e-38, %v1512
        %v1514 = vsel %vm1511, %v1513, %v1509
        %v1515 = vmul.f32 1.0, %v1514
        %v1516 = vrcp.pop %v1346
        %v1517 = vmul.f32 %v1346, %v1516
        %v1518 = vsub.f32 1.0, %v1517
        %v1519 = vmul.f32 %v1516, %v1518
        %v1520 = vadd.f32 %v1516, %v1519
        %vm1521 = vweird.f32 %v1346
        %vm1522 = vweird.f32 %v1516
        %vm1523 = vmor %vm1521, %vm1522
        %v1524 = vsel %vm1523, %v1516, %v1520
        %v1525 = vand.u32 2147483647, %v1346
        %vm1526 = vcmp.eq.f32.partialorder %v1525, 8.507059e+37
        %v1527 = vand.u32 %v1346, 2147483648
        %v1528 = vor.u32 1.1754944e-38, %v1527
        %v1529 = vsel %vm1526, %v1528, %v1524
        %v1530 = vmul.f32 1.0, %v1529
        %v1531 = vrcp.pop %v1347
        %v1532 = vmul.f32 %v1347, %v1531
        %v1533 = vsub.f32 1.0, %v1532
        %v1534 = vmul.f32 %v1531, %v1533
        %v1535 = vadd.f32 %v1531, %v1534
        %vm1536 = vweird.f32 %v1347
        %vm1537 = vweird.f32 %v1531
        %vm1538 = vmor %vm1536, %vm1537
        %v1539 = vsel %vm1538, %v1531, %v1535
        %v1540 = vand.u32 2147483647, %v1347
        %vm1541 = vcmp.eq.f32.partialorder %v1540, 8.507059e+37
        %v1542 = vand.u32 %v1347, 2147483648
        %v1543 = vor.u32 1.1754944e-38, %v1542
        %v1544 = vsel %vm1541, %v1543, %v1539
        %v1545 = vmul.f32 1.0, %v1544
        %v1546 = vrcp.pop %v1348
        %v1547 = vmul.f32 %v1348, %v1546
        %v1548 = vsub.f32 1.0, %v1547
        %v1549 = vmul.f32 %v1546, %v1548
        %v1550 = vadd.f32 %v1546, %v1549
        %vm1551 = vweird.f32 %v1348
        %vm1552 = vweird.f32 %v1546
        %vm1553 = vmor %vm1551, %vm1552
        %v1554 = vsel %vm1553, %v1546, %v1550
        %v1555 = vand.u32 2147483647, %v1348
        %vm1556 = vcmp.eq.f32.partialorder %v1555, 8.507059e+37
        %v1557 = vand.u32 %v1348, 2147483648
        %v1558 = vor.u32 1.1754944e-38, %v1557
        %v1559 = vsel %vm1556, %v1558, %v1554
        %v1560 = vmul.f32 1.0, %v1559
        %v1561 = vrcp.pop %v1349
        %v1562 = vmul.f32 %v1349, %v1561
        %v1563 = vsub.f32 1.0, %v1562
        %v1564 = vmul.f32 %v1561, %v1563
        %v1565 = vadd.f32 %v1561, %v1564
        %vm1566 = vweird.f32 %v1349
        %vm1567 = vweird.f32 %v1561
        %vm1568 = vmor %vm1566, %vm1567
        %v1569 = vsel %vm1568, %v1561, %v1565
        %v1570 = vand.u32 2147483647, %v1349
        %vm1571 = vcmp.eq.f32.partialorder %v1570, 8.507059e+37
        %v1572 = vand.u32 %v1349, 2147483648
        %v1573 = vor.u32 1.1754944e-38, %v1572
        %v1574 = vsel %vm1571, %v1573, %v1569
        %v1575 = vmul.f32 1.0, %v1574
        %v1576 = vrcp.pop %v1350
        %v1577 = vmul.f32 %v1350, %v1576
        %v1578 = vsub.f32 1.0, %v1577
        %v1579 = vmul.f32 %v1576, %v1578
        %v1580 = vadd.f32 %v1576, %v1579
        %vm1581 = vweird.f32 %v1350
        %vm1582 = vweird.f32 %v1576
        %vm1583 = vmor %vm1581, %vm1582
        %v1584 = vsel %vm1583, %v1576, %v1580
        %v1585 = vand.u32 2147483647, %v1350
        %vm1586 = vcmp.eq.f32.partialorder %v1585, 8.507059e+37
        %v1587 = vand.u32 %v1350, 2147483648
        %v1588 = vor.u32 1.1754944e-38, %v1587
        %v1589 = vsel %vm1586, %v1588, %v1584
        %v1590 = vmul.f32 1.0, %v1589
        %v1591 = vtanh.pop %v1240
        %v1592 = vtanh.pop %v1243
        %v1593 = vtanh.pop %v1246
        %v1594 = vtanh.pop %v1249
        %v1595 = vtanh.pop %v1252
        %v1596 = vtanh.pop %v1255
        %v1597 = vtanh.pop %v1258
        %v1598 = vtanh.pop %v1261
        %v1599 = vtanh.pop %v1264
        %v1600 = vtanh.pop %v1267
        %v1601 = vtanh.pop %v1270
        %v1602 = vtanh.pop %v1273
        %v1603 = vtanh.pop %v1276
        %v1604 = vtanh.pop %v1279
        %v1605 = vtanh.pop %v1282
        %v1606 = vtanh.pop %v1285
        %1623 = vrot.lane.b32.xlu0 %v1591, 32
        %v1624 = vpop.permute.xlu0 %1623
        %1625 = vrot.lane.b32.xlu0 %v1592, 32
        %v1626 = vpop.permute.xlu0 %1625
        %1627 = vrot.lane.b32.xlu0 %v1593, 32
        %v1628 = vpop.permute.xlu0 %1627
        %1629 = vrot.lane.b32.xlu0 %v1594, 32
        %v1630 = vpop.permute.xlu0 %1629
        %1631 = vrot.lane.b32.xlu0 %v1595, 32
        %v1632 = vpop.permute.xlu0 %1631
        %1633 = vrot.lane.b32.xlu0 %v1596, 32
        %v1634 = vpop.permute.xlu0 %1633
        %1635 = vrot.lane.b32.xlu0 %v1597, 32
        %v1636 = vpop.permute.xlu0 %1635
        %1637 = vrot.lane.b32.xlu0 %v1598, 32
        %v1638 = vpop.permute.xlu0 %1637
        %1639 = vrot.lane.b32.xlu0 %v1599, 32
        %v1640 = vpop.permute.xlu0 %1639
        %1641 = vrot.lane.b32.xlu0 %v1600, 32
        %v1642 = vpop.permute.xlu0 %1641
        %1643 = vrot.lane.b32.xlu0 %v1601, 32
        %v1644 = vpop.permute.xlu0 %1643
        %1645 = vrot.lane.b32.xlu0 %v1602, 32
        %v1646 = vpop.permute.xlu0 %1645
        %1647 = vrot.lane.b32.xlu0 %v1603, 32
        %v1648 = vpop.permute.xlu0 %1647
        %1649 = vrot.lane.b32.xlu0 %v1604, 32
        %v1650 = vpop.permute.xlu0 %1649
        %1651 = vrot.lane.b32.xlu0 %v1605, 32
        %v1652 = vpop.permute.xlu0 %1651
        %1653 = vrot.lane.b32.xlu0 %v1606, 32
        %v1654 = vpop.permute.xlu0 %1653
        %v1671 = vmul.f32 %v1365, %v1624
        %v1672 = vmul.f32 %v1380, %v1626
        %v1673 = vmul.f32 %v1395, %v1628
        %v1674 = vmul.f32 %v1410, %v1630
        %v1675 = vmul.f32 %v1425, %v1632
        %v1676 = vmul.f32 %v1440, %v1634
        %v1677 = vmul.f32 %v1455, %v1636
        %v1678 = vmul.f32 %v1470, %v1638
        %v1679 = vmul.f32 %v1485, %v1640
        %v1680 = vmul.f32 %v1500, %v1642
        %v1681 = vmul.f32 %v1515, %v1644
        %v1682 = vmul.f32 %v1530, %v1646
        %v1683 = vmul.f32 %v1545, %v1648
        %v1684 = vmul.f32 %v1560, %v1650
        %v1685 = vmul.f32 %v1575, %v1652
        %v1686 = vmul.f32 %v1590, %v1654
        %v1687 = vtanh.pop %v1671
        %v1688 = vtanh.pop %v1672
        %v1689 = vtanh.pop %v1673
        %v1690 = vtanh.pop %v1674
        %v1691 = vtanh.pop %v1675
        %v1692 = vtanh.pop %v1676
        %v1693 = vtanh.pop %v1677
        %v1694 = vtanh.pop %v1678
        %v1695 = vtanh.pop %v1679
        %v1696 = vtanh.pop %v1680
        %v1697 = vtanh.pop %v1681
        %v1698 = vtanh.pop %v1682
        %v1699 = vtanh.pop %v1683
        %v1700 = vtanh.pop %v1684
        %v1701 = vtanh.pop %v1685
        %v1702 = vtanh.pop %v1686
        %1719 = vrot.lane.b32.xlu0 %v1687, 64
        %v1720 = vpop.permute.xlu0 %1719
        %1721 = vrot.lane.b32.xlu0 %v1688, 64
        %v1722 = vpop.permute.xlu0 %1721
        %1723 = vrot.lane.b32.xlu0 %v1689, 64
        %v1724 = vpop.permute.xlu0 %1723
        %1725 = vrot.lane.b32.xlu0 %v1690, 64
        %v1726 = vpop.permute.xlu0 %1725
        %1727 = vrot.lane.b32.xlu0 %v1691, 64
        %v1728 = vpop.permute.xlu0 %1727
        %1729 = vrot.lane.b32.xlu0 %v1692, 64
        %v1730 = vpop.permute.xlu0 %1729
        %1731 = vrot.lane.b32.xlu0 %v1693, 64
        %v1732 = vpop.permute.xlu0 %1731
        %1733 = vrot.lane.b32.xlu0 %v1694, 64
        %v1734 = vpop.permute.xlu0 %1733
        %1735 = vrot.lane.b32.xlu0 %v1695, 64
        %v1736 = vpop.permute.xlu0 %1735
        %1737 = vrot.lane.b32.xlu0 %v1696, 64
        %v1738 = vpop.permute.xlu0 %1737
        %1739 = vrot.lane.b32.xlu0 %v1697, 64
        %v1740 = vpop.permute.xlu0 %1739
        %1741 = vrot.lane.b32.xlu0 %v1698, 64
        %v1742 = vpop.permute.xlu0 %1741
        %1743 = vrot.lane.b32.xlu0 %v1699, 64
        %v1744 = vpop.permute.xlu0 %1743
        %1745 = vrot.lane.b32.xlu0 %v1700, 64
        %v1746 = vpop.permute.xlu0 %1745
        %1747 = vrot.lane.b32.xlu0 %v1701, 64
        %v1748 = vpop.permute.xlu0 %1747
        %1749 = vrot.lane.b32.xlu0 %v1702, 64
        %v1750 = vpop.permute.xlu0 %1749
        %v1767 = vmul.f32 %v1365, %v1720
        %v1768 = vmul.f32 %v1380, %v1722
        %v1769 = vmul.f32 %v1395, %v1724
        %v1770 = vmul.f32 %v1410, %v1726
        %v1771 = vmul.f32 %v1425, %v1728
        %v1772 = vmul.f32 %v1440, %v1730
        %v1773 = vmul.f32 %v1455, %v1732
        %v1774 = vmul.f32 %v1470, %v1734
        %v1775 = vmul.f32 %v1485, %v1736
        %v1776 = vmul.f32 %v1500, %v1738
        %v1777 = vmul.f32 %v1515, %v1740
        %v1778 = vmul.f32 %v1530, %v1742
        %v1779 = vmul.f32 %v1545, %v1744
        %v1780 = vmul.f32 %v1560, %v1746
        %v1781 = vmul.f32 %v1575, %v1748
        %v1782 = vmul.f32 %v1590, %v1750
        %v1783 = vld [vmem:[%s7] sm:$0xff]
        %v1784 = vld [vmem:[%s7 + $0x8] sm:$0xff]
        %v1785 = vld [vmem:[%s7 + $0x10] sm:$0xff]
        %v1786 = vld [vmem:[%s7 + $0x18] sm:$0xff]
        %v1787 = vld [vmem:[#allocation2] sm:$0x1]
        %v1789 = vperm.slane %v1787, 0
        %1807 = vrot.lane.b32.xlu0 %v1767, 64
        %v1808 = vpop.permute.xlu0 %1807
        %1809 = vrot.lane.b32.xlu0 %v1768, 64
        %v1810 = vpop.permute.xlu0 %1809
        %1811 = vrot.lane.b32.xlu0 %v1769, 64
        %v1812 = vpop.permute.xlu0 %1811
        %1813 = vrot.lane.b32.xlu0 %v1770, 64
        %v1814 = vpop.permute.xlu0 %1813
        %1815 = vrot.lane.b32.xlu0 %v1771, 64
        %v1816 = vpop.permute.xlu0 %1815
        %1817 = vrot.lane.b32.xlu0 %v1772, 64
        %v1818 = vpop.permute.xlu0 %1817
        %1819 = vrot.lane.b32.xlu0 %v1773, 64
        %v1820 = vpop.permute.xlu0 %1819
        %1821 = vrot.lane.b32.xlu0 %v1774, 64
        %v1822 = vpop.permute.xlu0 %1821
        %1823 = vrot.lane.b32.xlu0 %v1775, 64
        %v1824 = vpop.permute.xlu0 %1823
        %1825 = vrot.lane.b32.xlu0 %v1776, 64
        %v1826 = vpop.permute.xlu0 %1825
        %1827 = vrot.lane.b32.xlu0 %v1777, 64
        %v1828 = vpop.permute.xlu0 %1827
        %1829 = vrot.lane.b32.xlu0 %v1778, 64
        %v1830 = vpop.permute.xlu0 %1829
        %1831 = vrot.lane.b32.xlu0 %v1779, 64
        %v1832 = vpop.permute.xlu0 %1831
        %1833 = vrot.lane.b32.xlu0 %v1780, 64
        %v1834 = vpop.permute.xlu0 %1833
        %1835 = vrot.lane.b32.xlu0 %v1781, 64
        %v1836 = vpop.permute.xlu0 %1835
        %1837 = vrot.lane.b32.xlu0 %v1782, 64
        %v1838 = vpop.permute.xlu0 %1837
        %v1839 = vsel %vm524, %v1808, 0
        %v1841 = vsel %vm524, %v1810, 0
        %v1843 = vsel %vm524, %v1812, 0
        %v1845 = vsel %vm524, %v1814, 0
        %v1847 = vsel %vm524, %v1816, 0
        %v1849 = vsel %vm524, %v1818, 0
        %v1851 = vsel %vm524, %v1820, 0
        %v1853 = vsel %vm524, %v1822, 0
        %v1855 = vsel %vm524, %v1824, 0
        %v1857 = vsel %vm524, %v1826, 0
        %v1859 = vsel %vm524, %v1828, 0
        %v1861 = vsel %vm524, %v1830, 0
        %v1863 = vsel %vm524, %v1832, 0
        %v1865 = vsel %vm524, %v1834, 0
        %v1867 = vsel %vm524, %v1836, 0
        %v1869 = vsel %vm524, %v1838, 0
        %1871 = vmatpush.msra.mxu0 0.0
        %1872 = vmatpush.msra.mxu0 0.0
        %1873 = vmatpush.msra.mxu0 0.0
        %1874 = vmatpush.msra.mxu0 0.0
        %1875 = vmatpush.msra.mxu0 0.0
        %1876 = vmatpush.msra.mxu0 0.0
        %1877 = vmatpush.msra.mxu0 0.0
        %1878 = vmatpush.msra.mxu0 0.0
        %1879 = vmatpush.msra.mxu0 0.0
        %1880 = vmatpush.msra.mxu0 0.0
        %1881 = vmatpush.msra.mxu0 0.0
        %1882 = vmatpush.msra.mxu0 0.0
        %1883 = vmatpush.msra.mxu0 %v1786
        %1884 = vmatpush.msra.mxu0 %v1785
        %1885 = vmatpush.msra.mxu0 %v1784
        %1886 = vmatpush.msra.mxu0 %v1783
        %1887 = vmatmul.f32.gmra.mxu0 %v1839
        %v1888 = vpop.f32.mrf.mxu0
        %v1889 = vadd.f32 %v1789, %v1888
        %1890 = vmatmul.f32.gmra.mxu0 %v1841
        %v1891 = vpop.f32.mrf.mxu0
        %v1892 = vadd.f32 %v1789, %v1891
        %1893 = vmatmul.f32.gmra.mxu0 %v1843
        %v1894 = vpop.f32.mrf.mxu0
        %v1895 = vadd.f32 %v1789, %v1894
        %1896 = vmatmul.f32.gmra.mxu0 %v1845
        %v1897 = vpop.f32.mrf.mxu0
        %v1898 = vadd.f32 %v1789, %v1897
        %1899 = vmatmul.f32.gmra.mxu0 %v1847
        %v1900 = vpop.f32.mrf.mxu0
        %v1901 = vadd.f32 %v1789, %v1900
        %1902 = vmatmul.f32.gmra.mxu0 %v1849
        %v1903 = vpop.f32.mrf.mxu0
        %v1904 = vadd.f32 %v1789, %v1903
        %1905 = vmatmul.f32.gmra.mxu0 %v1851
        %v1906 = vpop.f32.mrf.mxu0
        %v1907 = vadd.f32 %v1789, %v1906
        %1908 = vmatmul.f32.gmra.mxu0 %v1853
        %v1909 = vpop.f32.mrf.mxu0
        %v1910 = vadd.f32 %v1789, %v1909
        %1911 = vmatmul.f32.gmra.mxu0 %v1855
        %v1912 = vpop.f32.mrf.mxu0
        %v1913 = vadd.f32 %v1789, %v1912
        %1914 = vmatmul.f32.gmra.mxu0 %v1857
        %v1915 = vpop.f32.mrf.mxu0
        %v1916 = vadd.f32 %v1789, %v1915
        %1917 = vmatmul.f32.gmra.mxu0 %v1859
        %v1918 = vpop.f32.mrf.mxu0
        %v1919 = vadd.f32 %v1789, %v1918
        %1920 = vmatmul.f32.gmra.mxu0 %v1861
        %v1921 = vpop.f32.mrf.mxu0
        %v1922 = vadd.f32 %v1789, %v1921
        %1923 = vmatmul.f32.gmra.mxu0 %v1863
        %v1924 = vpop.f32.mrf.mxu0
        %v1925 = vadd.f32 %v1789, %v1924
        %1926 = vmatmul.f32.gmra.mxu0 %v1865
        %v1927 = vpop.f32.mrf.mxu0
        %v1928 = vadd.f32 %v1789, %v1927
        %1929 = vmatmul.f32.gmra.mxu0 %v1867
        %v1930 = vpop.f32.mrf.mxu0
        %v1931 = vadd.f32 %v1789, %v1930
        %1932 = vmatmul.f32.gmra.mxu0 %v1869
        %v1933 = vpop.f32.mrf.mxu0
        %v1934 = vadd.f32 %v1789, %v1933
        %1935 = vdwg.mxu0
        %1936 = vst.msk [vmem:[%s374] sm:$0xff] %vm398, %v1889
        %1937 = vst.msk [vmem:[%s374 + $0x8] sm:$0xff] %vm398, %v1892
        %1938 = vst.msk [vmem:[%s374 + $0x10] sm:$0xff] %vm398, %v1895
        %1939 = vst.msk [vmem:[%s374 + $0x18] sm:$0xff] %vm398, %v1898
        %1940 = vst.msk [vmem:[%s374 + $0x20] sm:$0xff] %vm398, %v1901
        %1941 = vst.msk [vmem:[%s374 + $0x28] sm:$0xff] %vm398, %v1904
        %1942 = vst.msk [vmem:[%s374 + $0x30] sm:$0xff] %vm398, %v1907
        %1943 = vst.msk [vmem:[%s374 + $0x38] sm:$0xff] %vm398, %v1910
        %1944 = vst.msk [vmem:[%s374 + $0x40] sm:$0xff] %vm398, %v1913
        %1945 = vst.msk [vmem:[%s374 + $0x48] sm:$0xff] %vm398, %v1916
        %1946 = vst.msk [vmem:[%s374 + $0x50] sm:$0xff] %vm398, %v1919
        %1947 = vst.msk [vmem:[%s374 + $0x58] sm:$0xff] %vm398, %v1922
        %1948 = vst.msk [vmem:[%s374 + $0x60] sm:$0xff] %vm398, %v1925
        %1949 = vst.msk [vmem:[%s374 + $0x68] sm:$0xff] %vm398, %v1928
        %1950 = vst.msk [vmem:[%s374 + $0x70] sm:$0xff] %vm398, %v1931
        %1951 = vst.msk [vmem:[%s374 + $0x78] sm:$0xff] %vm398, %v1934
        %1984 = vrot.lane.b32.xlu0 %v1022, 32
        %v1985 = vpop.permute.xlu0 %1984
        %1986 = vrot.lane.b32.xlu0 %v1023, 32
        %v1987 = vpop.permute.xlu0 %1986
        %1988 = vrot.lane.b32.xlu0 %v1024, 32
        %v1989 = vpop.permute.xlu0 %1988
        %1990 = vrot.lane.b32.xlu0 %v1025, 32
        %v1991 = vpop.permute.xlu0 %1990
        %1992 = vrot.lane.b32.xlu0 %v1026, 32
        %v1993 = vpop.permute.xlu0 %1992
        %1994 = vrot.lane.b32.xlu0 %v1027, 32
        %v1995 = vpop.permute.xlu0 %1994
        %1996 = vrot.lane.b32.xlu0 %v1028, 32
        %v1997 = vpop.permute.xlu0 %1996
        %1998 = vrot.lane.b32.xlu0 %v1029, 32
        %v1999 = vpop.permute.xlu0 %1998
        %2000 = vrot.lane.b32.xlu0 %v1030, 32
        %v2001 = vpop.permute.xlu0 %2000
        %2002 = vrot.lane.b32.xlu0 %v1031, 32
        %v2003 = vpop.permute.xlu0 %2002
        %2004 = vrot.lane.b32.xlu0 %v1032, 32
        %v2005 = vpop.permute.xlu0 %2004
        %2006 = vrot.lane.b32.xlu0 %v1033, 32
        %v2007 = vpop.permute.xlu0 %2006
        %2008 = vrot.lane.b32.xlu0 %v1034, 32
        %v2009 = vpop.permute.xlu0 %2008
        %2010 = vrot.lane.b32.xlu0 %v1035, 32
        %v2011 = vpop.permute.xlu0 %2010
        %2012 = vrot.lane.b32.xlu0 %v1036, 32
        %v2013 = vpop.permute.xlu0 %2012
        %2014 = vrot.lane.b32.xlu0 %v1037, 32
        %v2015 = vpop.permute.xlu0 %2014
        %2048 = vrot.lane.b32.xlu0 %v1671, 96
        %v2049 = vpop.permute.xlu0 %2048
        %2050 = vrot.lane.b32.xlu0 %v1672, 96
        %v2051 = vpop.permute.xlu0 %2050
        %2052 = vrot.lane.b32.xlu0 %v1673, 96
        %v2053 = vpop.permute.xlu0 %2052
        %2054 = vrot.lane.b32.xlu0 %v1674, 96
        %v2055 = vpop.permute.xlu0 %2054
        %2056 = vrot.lane.b32.xlu0 %v1675, 96
        %v2057 = vpop.permute.xlu0 %2056
        %2058 = vrot.lane.b32.xlu0 %v1676, 96
        %v2059 = vpop.permute.xlu0 %2058
        %2060 = vrot.lane.b32.xlu0 %v1677, 96
        %v2061 = vpop.permute.xlu0 %2060
        %2062 = vrot.lane.b32.xlu0 %v1678, 96
        %v2063 = vpop.permute.xlu0 %2062
        %2064 = vrot.lane.b32.xlu0 %v1679, 96
        %v2065 = vpop.permute.xlu0 %2064
        %2066 = vrot.lane.b32.xlu0 %v1680, 96
        %v2067 = vpop.permute.xlu0 %2066
        %2068 = vrot.lane.b32.xlu0 %v1681, 96
        %v2069 = vpop.permute.xlu0 %2068
        %2070 = vrot.lane.b32.xlu0 %v1682, 96
        %v2071 = vpop.permute.xlu0 %2070
        %2072 = vrot.lane.b32.xlu0 %v1683, 96
        %v2073 = vpop.permute.xlu0 %2072
        %2074 = vrot.lane.b32.xlu0 %v1684, 96
        %v2075 = vpop.permute.xlu0 %2074
        %2076 = vrot.lane.b32.xlu0 %v1685, 96
        %v2077 = vpop.permute.xlu0 %2076
        %2078 = vrot.lane.b32.xlu0 %v1686, 96
        %v2079 = vpop.permute.xlu0 %2078
        %v2096 = vsel %vm524, %v1159, %v1985
        %v2097 = vsel %vm524, %v1161, %v1987
        %v2098 = vsel %vm524, %v1163, %v1989
        %v2099 = vsel %vm524, %v1165, %v1991
        %v2100 = vsel %vm524, %v1167, %v1993
        %v2101 = vsel %vm524, %v1169, %v1995
        %v2102 = vsel %vm524, %v1171, %v1997
        %v2103 = vsel %vm524, %v1173, %v1999
        %v2104 = vsel %vm524, %v1175, %v2001
        %v2105 = vsel %vm524, %v1177, %v2003
        %v2106 = vsel %vm524, %v1179, %v2005
        %v2107 = vsel %vm524, %v1181, %v2007
        %v2108 = vsel %vm524, %v1183, %v2009
        %v2109 = vsel %vm524, %v1185, %v2011
        %v2110 = vsel %vm524, %v1187, %v2013
        %v2111 = vsel %vm524, %v1189, %v2015
        %vm2112 = vcmask 523264
        %v2113 = vsel %vm2112, %v2096, %v1767
        %v2114 = vsel %vm2112, %v2097, %v1768
        %v2115 = vsel %vm2112, %v2098, %v1769
        %v2116 = vsel %vm2112, %v2099, %v1770
        %v2117 = vsel %vm2112, %v2100, %v1771
        %v2118 = vsel %vm2112, %v2101, %v1772
        %v2119 = vsel %vm2112, %v2102, %v1773
        %v2120 = vsel %vm2112, %v2103, %v1774
        %v2121 = vsel %vm2112, %v2104, %v1775
        %v2122 = vsel %vm2112, %v2105, %v1776
        %v2123 = vsel %vm2112, %v2106, %v1777
        %v2124 = vsel %vm2112, %v2107, %v1778
        %v2125 = vsel %vm2112, %v2108, %v1779
        %v2126 = vsel %vm2112, %v2109, %v1780
        %v2127 = vsel %vm2112, %v2110, %v1781
        %v2128 = vsel %vm2112, %v2111, %v1782
        %vm2129 = vcmask 785408
        %v2130 = vsel %vm2129, %v2113, %v2049
        %v2131 = vsel %vm2129, %v2114, %v2051
        %v2132 = vsel %vm2129, %v2115, %v2053
        %v2133 = vsel %vm2129, %v2116, %v2055
        %v2134 = vsel %vm2129, %v2117, %v2057
        %v2135 = vsel %vm2129, %v2118, %v2059
        %v2136 = vsel %vm2129, %v2119, %v2061
        %v2137 = vsel %vm2129, %v2120, %v2063
        %v2138 = vsel %vm2129, %v2121, %v2065
        %v2139 = vsel %vm2129, %v2122, %v2067
        %v2140 = vsel %vm2129, %v2123, %v2069
        %v2141 = vsel %vm2129, %v2124, %v2071
        %v2142 = vsel %vm2129, %v2125, %v2073
        %v2143 = vsel %vm2129, %v2126, %v2075
        %v2144 = vsel %vm2129, %v2127, %v2077
        %v2145 = vsel %vm2129, %v2128, %v2079
        %2146 = vst [vmem:[%s363] sm:$0xff] %v2130
        %2147 = vst [vmem:[%s363 + $0x8] sm:$0xff] %v2131
        %2148 = vst [vmem:[%s363 + $0x10] sm:$0xff] %v2132
        %2149 = vst [vmem:[%s363 + $0x18] sm:$0xff] %v2133
        %2150 = vst [vmem:[%s363 + $0x20] sm:$0xff] %v2134
        %2151 = vst [vmem:[%s363 + $0x28] sm:$0xff] %v2135
        %2152 = vst [vmem:[%s363 + $0x30] sm:$0xff] %v2136
        %2153 = vst [vmem:[%s363 + $0x38] sm:$0xff] %v2137
        %2154 = vst [vmem:[%s363 + $0x40] sm:$0xff] %v2138
        %2155 = vst [vmem:[%s363 + $0x48] sm:$0xff] %v2139
        %2156 = vst [vmem:[%s363 + $0x50] sm:$0xff] %v2140
        %2157 = vst [vmem:[%s363 + $0x58] sm:$0xff] %v2141
        %2158 = vst [vmem:[%s363 + $0x60] sm:$0xff] %v2142
        %2159 = vst [vmem:[%s363 + $0x68] sm:$0xff] %v2143
        %2160 = vst [vmem:[%s363 + $0x70] sm:$0xff] %v2144
        %2161 = vst [vmem:[%s363 + $0x78] sm:$0xff] %v2145
        %s2162 = smul.u32 16, %s27
        %p2163 = scmp.lt.s32.totalorder %s2162, 47
        %s2164 = scalar_select %p2163, %s2162, 47
        %s2165 = smul.addr %s2164, 8
        %s2166 = scalar_lea.vmem %s9, %s2165
        %s2167 = sand.u32 %s255, 1
        %s2168 = scalar_lea.sflag [#allocation4], %s2167
        %s2169 = sand.u32 %s255, 1
        %s2170 = smul.addr %s2169, 128
        %s2171 = scalar_lea.vmem [#allocation3], %s2170
        // Predicated region
        $region57: #{tpu_custom_call.1} parent=55 // pred_check
          %p2172 = pneg %p239
        $region58: #{tpu_custom_call.1} parent=55 // pred_check_branch
          %2174 = sbr.rel (%p2172) target = $region60
        $region59: #{tpu_custom_call.1} parent=55 // pred_region
          %s2175 = smul.u32 16, %s27
        $region60: #{tpu_custom_call.1} parent=55 // pred_fallthru
          _
        // Predicated region
        $region61: #{tpu_custom_call.1} parent=55 // pred_check
          %p2176 = pneg %p265
        $region62: #{tpu_custom_call.1} parent=55 // pred_check_branch
          %2178 = sbr.rel (%p2176) target = $region64
        $region63: #{tpu_custom_call.1} parent=55 // pred_region
          %s2179 = smul.u32 16, %s27
          %2181 = vsyncadd %s2168, 0
          %s2182 = smul.addr %s2179, 8
          %s2183 = scalar_lea.hbm %s10, %s2182
          %s2184 = sshll.u32 %s2171, 4
          %s2185 = int_to_ptr.vmem [resolvable:$true] %s2184
          %s2186 = sshll.u32 %s2183, 4
          %s2187 = int_to_ptr.hbm [resolvable:$true] %s2186
          %2192 = dma.vmem_to_hbm [thread:$0]  %s2185, 2048, %s2187, %s2168, 128, 128, 8
        $region64: #{tpu_custom_call.1} parent=55 // pred_fallthru
          _
      $region56: #{tpu_custom_call.1} parent=5 // pred_fallthru
        _
      %p2193 = scmp.le.s32.totalorder 2, %s22
      // Predicated region
      $region65: #{tpu_custom_call.1} parent=5 // pred_check
        %p2194 = pneg %p2193
      $region66: #{tpu_custom_call.1} parent=5 // pred_check_branch
        %2196 = sbr.rel (%p2194) target = $region68
      $region67: #{tpu_custom_call.1} parent=5 // pred_region
        %s2197 = ssub.s32 %s22, 2
        // Predicated region
        $region69: #{tpu_custom_call.1} parent=67 // pred_check
          %p2198 = pneg %p245
        $region70: #{tpu_custom_call.1} parent=67 // pred_check_branch
          %2200 = sbr.rel (%p2198) target = $region72
        $region71: #{tpu_custom_call.1} parent=67 // pred_region
          %s2201 = smul.u32 16, %s28
          %p2202 = scmp.lt.s32.totalorder %s2201, 47
          %s2203 = scalar_select %p2202, %s2201, 47
          %s2204 = smul.addr %s2203, 8
          %s2205 = scalar_lea.vmem %s9, %s2204
        $region72: #{tpu_custom_call.1} parent=67 // pred_fallthru
          _
        // Predicated region
        $region73: #{tpu_custom_call.1} parent=67 // pred_check
          %p2206 = pneg %p271
        $region74: #{tpu_custom_call.1} parent=67 // pred_check_branch
          %2208 = sbr.rel (%p2206) target = $region76
        $region75: #{tpu_custom_call.1} parent=67 // pred_region
          %s2209 = sand.u32 %s256, 1
          %s2210 = scalar_lea.sflag [#allocation4], %s2209
          %s2211 = sand.u32 %s256, 1
          %s2212 = smul.addr %s2211, 128
          %s2213 = scalar_lea.vmem [#allocation3], %s2212
          %2215 = dma.done %s2210, 2048
        $region76: #{tpu_custom_call.1} parent=67 // pred_fallthru
          _
      $region68: #{tpu_custom_call.1} parent=5 // pred_fallthru
        _
    $region6: #{tpu_custom_call.1} parent=1 // loop_footer
      %s26 = sadd.s32 1, %s22
    $region7: #{tpu_custom_call.1} parent=1 // loop_footer_branch
      %21 = sbr.rel target = $region3
    $region8: #{tpu_custom_call.1} parent=1 // loop_exit
      _
    %2216 = vsyncpa [#allocation4], 1
    %s2217 = scalar_lea.sflag [#allocation4], 1
    %2218 = vsyncpa %s2217, 1

</llo_original>
